<compile_context>
chip_gen: v7x
topology: tpu7x:2x2x1
jax: 0.10.0
libtpu: 0.0.40
codegen_flags: <defaults>
</compile_context>

<pallas_src>
import math

import jax
import jax.numpy as jnp
from jax import lax
from jax.experimental import pallas as pl
from jax.experimental.pallas import tpu as pltpu

B = 2
S = 16               # must equal B * H for the reference mask broadcast to work
E = 128              # embedding_dim
H = 8                # num_heads
HD = E // H          # head_dim = 16
FF = 4 * E           # feed-forward hidden = 512
N = B * S            # flattened token count = 32
NEG_BIG = -1e30      # kills cross-batch attention exactly (exp underflows to 0)


# ----------------------------------------------------------------------------
# Pallas kernel: single invocation (no grid), everything resident in VMEM.
# ----------------------------------------------------------------------------
def transformer_layer_kernel(x_ref, mask_ref, hmask_ref, wqkv_ref,
                             w1_ref, b1_ref,
                             w2_ref, b2_ref,
                             w3_ref, b3_ref,
                             o_ref):
    x = x_ref[...]            # (N, E) f32
    mask = mask_ref[...]      # (N, N) f32 additive mask (block-diag over batch)
    hmask = hmask_ref[...]    # (H, E) f32 0/1 head-column masks

    # ---- fused QKV projection: one (N,E)x(E,3E) bf16 matmul, f32 accumulate ----
    # (1/sqrt(head_dim) is already folded into the Wq columns on the host.)
    qkv = jnp.dot(x.astype(jnp.bfloat16), wqkv_ref[...],
                  preferred_element_type=jnp.float32)            # (N, 3E) f32
    q = qkv[:, :E]            # 128-aligned lane slices: no relayout
    k = qkv[:, E:2 * E]
    v = qkv[:, 2 * E:3 * E]

    # ---- attention scores for ALL heads with ONE full-width matmul ----
    # Row block h of `qm` is Q with every column outside head h zeroed, so the
    # 128-deep contraction against the full K equals Q_h @ K_h^T exactly.
    qm = (q[None, :, :] * hmask[:, None, :]).reshape(H * N, E)   # (H*N, E) f32
    dn = (((1,), (1,)), ((), ()))        # contract dim-1 of both (no k.T built)
    scores = lax.dot_general(qm.astype(jnp.bfloat16), k.astype(jnp.bfloat16), dn,
                             preferred_element_type=jnp.float32)  # (H*N, N)
    scores = scores.reshape(H, N, N) + mask[None, :, :]

    # ---- softmax over all heads at once (f32, EUP approx recip for denom) ----
    m = jnp.max(scores, axis=-1, keepdims=True)
    p = jnp.exp(scores - m)
    p = p * pl.reciprocal(jnp.sum(p, axis=-1, keepdims=True), approx=True)
    p_bf = p.astype(jnp.bfloat16)                                 # (H, N, N)

    # ---- context: back-to-back accumulating matmuls (no slices, no concat) ----
    # vm[h] is V with every column outside head h zeroed, so P_h @ vm[h] drops
    # the head-h context straight into its contiguous output columns; summing
    # over heads yields the head-contiguous (N, E) context.
    vm = (v[None, :, :] * hmask[:, None, :]).astype(jnp.bfloat16)  # (H, N, E)
    ctx = jnp.zeros((N, E), jnp.float32)
    for h in range(H):                                             # unrolled, H=8
        ctx = ctx + jnp.dot(p_bf[h], vm[h], preferred_element_type=jnp.float32)

    # ---- output projection + residual + "norm" #1 (divide by unbiased var) ----
    lin1 = jnp.dot(ctx.astype(jnp.bfloat16), w1_ref[...],
                   preferred_element_type=jnp.float32) + b1_ref[...]
    res1 = lin1 + x
    mean1 = jnp.mean(res1, axis=-1, keepdims=True)
    c1 = res1 - mean1
    var1 = jnp.sum(c1 * c1, axis=-1, keepdims=True) * (1.0 / (E - 1))
    ln1 = c1 * pl.reciprocal(var1, approx=True)   # module divides by unbiased var

    # ---- feed-forward (bf16 inputs, f32 accumulation) ----
    lin2 = jnp.dot(ln1.astype(jnp.bfloat16), w2_ref[...],
                   preferred_element_type=jnp.float32) + b2_ref[...]
    r = jnp.maximum(lin2, 0.0)
    lin3 = jnp.dot(r.astype(jnp.bfloat16), w3_ref[...],
                   preferred_element_type=jnp.float32) + b3_ref[...]

    # ---- residual + "norm" #2 ----
    res2 = lin3 + ln1
    mean2 = jnp.mean(res2, axis=-1, keepdims=True)
    c2 = res2 - mean2
    var2 = jnp.sum(c2 * c2, axis=-1, keepdims=True) * (1.0 / (E - 1))
    o_ref[...] = c2 * pl.reciprocal(var2, approx=True)


def transformer_layer(x_flat, mask_big, head_masks, wqkv,
                      w1, b1, w2, b2, w3, b3):
    # No grid: one kernel invocation, whole arrays resident in VMEM (<1 MiB).
    # At N=32 splitting across a grid (or the two v7x TCs) only adds overhead.
    vmem = lambda: pl.BlockSpec(memory_space=pltpu.MemorySpace.VMEM)
    return pl.pallas_call(
        transformer_layer_kernel,
        out_shape=jax.ShapeDtypeStruct((N, E), jnp.float32),
        in_specs=[vmem() for _ in range(10)],
        out_specs=vmem(),
    )(x_flat, mask_big, head_masks, wqkv, w1, b1, w2, b2, w3, b3)


# ----------------------------------------------------------------------------
# Pure-JAX reference mirroring the PyTorch forward op-by-op (f32, HIGHEST).
# ----------------------------------------------------------------------------
def reference_forward(x, mask_add, wq, wk, wv, W1, b1, W2, b2, W3, b3):
    P = jax.lax.Precision.HIGHEST
    mm = lambda a, b: jnp.matmul(a, b, precision=P)

    query, key, value = mm(x, wq), mm(x, wk), mm(x, wv)

    def split_heads(t):  # reshape(B,S,HD,H) -> transpose(2,3) -> transpose(1,2) -> (B*H,S,HD)
        return t.reshape(B, S, HD, H).transpose(0, 3, 1, 2).reshape(B * H, S, HD)

    q, k, v = split_heads(query), split_heads(key), split_heads(value)
    scores = mm(q, k.transpose(0, 2, 1)) / math.sqrt(HD)
    scores = scores + mask_add[None, :, :]          # the original (buggy) broadcast
    probs = jax.nn.softmax(scores, axis=2)
    ctx = mm(probs, v)                              # (B*H, S, HD)
    attn_out = ctx.reshape(B, H, S, HD).transpose(0, 2, 3, 1).reshape(B, S, E)

    lin1 = mm(attn_out, W1.T) + b1
    res1 = lin1 + x

    def layer_norm(t):
        mean = jnp.mean(t, axis=2, keepdims=True)
        var = jnp.var(t, axis=2, keepdims=True, ddof=1)
        return (t - mean) / var                     # divides by variance (as in module)

    ln1 = layer_norm(res1)
    lin2 = mm(ln1, W2.T) + b2
    r = jnp.maximum(lin2, 0.0)
    lin3 = mm(r, W3.T) + b3
    return layer_norm(lin3 + ln1)


if __name__ == "__main__":
    key = jax.random.PRNGKey(0)
    keys = jax.random.split(key, 12)

    # --- deterministic parameter init (shapes from the module __init__) ---
    wq = jax.random.uniform(keys[0], (E, E), jnp.float32)          # torch.rand
    wk = jax.random.uniform(keys[1], (E, E), jnp.float32)
    wv = jax.random.uniform(keys[2], (E, E), jnp.float32)
    lim1 = 1.0 / math.sqrt(E)
    W1 = jax.random.uniform(keys[3], (E, E), jnp.float32, -lim1, lim1)     # Linear(128,128)
    b1 = jax.random.uniform(keys[4], (E,), jnp.float32, -lim1, lim1)
    W2 = jax.random.uniform(keys[5], (FF, E), jnp.float32, -lim1, lim1)    # Linear(128,512)
    b2 = jax.random.uniform(keys[6], (FF,), jnp.float32, -lim1, lim1)
    lim3 = 1.0 / math.sqrt(FF)
    W3 = jax.random.uniform(keys[7], (E, FF), jnp.float32, -lim3, lim3)    # Linear(512,128)
    b3 = jax.random.uniform(keys[8], (E,), jnp.float32, -lim3, lim3)

    # --- deterministic example inputs ---
    x = jax.random.normal(keys[9], (B, S, E), jnp.float32) * 0.1
    # token_attention_masks: batch 0 has 5 padding tokens, batch 1 none
    token_masks = jnp.concatenate(
        [jnp.concatenate([jnp.ones((1, S - 5), jnp.int32), jnp.zeros((1, 5), jnp.int32)], axis=1),
         jnp.ones((1, S), jnp.int32)], axis=0)                     # (B, S)

    # additive mask exactly as the module builds it: 0 -> -1000, 1 -> 0,
    # repeat_interleave over heads, reshape to (B*H, S) (== (S, S) here)
    mask_rep = jnp.repeat(token_masks[:, None, :], H, axis=1).reshape(B * H, S)
    mask_add = jnp.where(mask_rep == 0, -1000.0, 0.0).astype(jnp.float32)

    # --- kernel-side inputs (host-side glue, plain JAX) ---
    # Flattened-batch additive mask: the same (S,S) matrix on every diagonal
    # block (reproducing the reference broadcast), -1e30 on cross-batch blocks
    # so those attention probabilities are exactly zero.
    mask_big = jnp.full((N, N), NEG_BIG, jnp.float32)
    for bidx in range(B):
        mask_big = mask_big.at[bidx * S:(bidx + 1) * S,
                               bidx * S:(bidx + 1) * S].set(mask_add)

    # 0/1 head-column masks for the head-contiguous layout: head h owns
    # contiguous columns [h*HD:(h+1)*HD].
    head_masks = (jnp.arange(E, dtype=jnp.int32)[None, :] // HD
                  == jnp.arange(H, dtype=jnp.int32)[:, None]).astype(jnp.float32)  # (H, E)

    # Head-contiguous column permutation: head h uses interleaved columns
    # [d*H + h]; rearrange so head h occupies contiguous columns [h*HD:(h+1)*HD].
    def head_contig_cols(w):                       # (E, E) -> (E, E)
        return w.reshape(E, HD, H).transpose(0, 2, 1).reshape(E, E)

    wq_hc = head_contig_cols(wq) / math.sqrt(HD)   # fold 1/sqrt(head_dim) into Wq
    wk_hc = head_contig_cols(wk)
    wv_hc = head_contig_cols(wv)
    wqkv = jnp.concatenate([wq_hc, wk_hc, wv_hc], axis=1).astype(jnp.bfloat16)  # (E, 3E)

    # W1 with rows permuted head-contiguously so the interleaved concat of the
    # attention output never needs to be materialized.
    w1_hc = W1.T.reshape(HD, H, E).transpose(1, 0, 2).reshape(E, E).astype(jnp.bfloat16)
    w2t = W2.T.astype(jnp.bfloat16)                # (E, FF)
    w3t = W3.T.astype(jnp.bfloat16)                # (FF, E)

    x_flat = x.reshape(N, E)

    out_flat = transformer_layer(
        x_flat, mask_big, head_masks, wqkv,
        w1_hc, b1.reshape(1, E),
        w2t, b2.reshape(1, FF),
        w3t, b3.reshape(1, E),
    )
    out = jax.block_until_ready(out_flat).reshape(B, S, E)

    ref = jax.block_until_ready(
        reference_forward(x, mask_add, wq, wk, wv, W1, b1, W2, b2, W3, b3))

    if not jnp.allclose(out, ref, rtol=2e-2, atol=2e-2):
        raise AssertionError("Pallas kernel output does not match reference")

    print("KERNEL_OK")
</pallas_src>

<mosaic_0001>
module attributes {stable_mosaic.version = 11 : i64} {
  func.func @transformer_layer_kernel(%arg0: memref<32x128xf32, #tpu.memory_space<vmem>>, %arg1: memref<32x32xf32, #tpu.memory_space<vmem>>, %arg2: memref<8x128xf32, #tpu.memory_space<vmem>>, %arg3: memref<128x384xbf16, #tpu.memory_space<vmem>>, %arg4: memref<128x128xbf16, #tpu.memory_space<vmem>>, %arg5: memref<1x128xf32, #tpu.memory_space<vmem>>, %arg6: memref<128x512xbf16, #tpu.memory_space<vmem>>, %arg7: memref<1x512xf32, #tpu.memory_space<vmem>>, %arg8: memref<512x128xbf16, #tpu.memory_space<vmem>>, %arg9: memref<1x128xf32, #tpu.memory_space<vmem>>, %arg10: memref<32x128xf32, #tpu.memory_space<vmem>>) attributes {dimension_semantics = [], scalar_prefetch = 0 : i64, scratch_operands = 0 : i64, tpu.core_type = #tpu.core_type<tc>} {
    %c0 = arith.constant 0 : index
    %c0_0 = arith.constant 0 : index
    %0 = vector.load %arg0[%c0, %c0_0] : memref<32x128xf32, #tpu.memory_space<vmem>>, vector<32x128xf32>
    %c0_1 = arith.constant 0 : index
    %c0_2 = arith.constant 0 : index
    %1 = vector.load %arg1[%c0_1, %c0_2] : memref<32x32xf32, #tpu.memory_space<vmem>>, vector<32x32xf32>
    %c0_3 = arith.constant 0 : index
    %c0_4 = arith.constant 0 : index
    %2 = vector.load %arg2[%c0_3, %c0_4] : memref<8x128xf32, #tpu.memory_space<vmem>>, vector<8x128xf32>
    %3 = arith.truncf %0 : vector<32x128xf32> to vector<32x128xbf16>
    %c0_5 = arith.constant 0 : index
    %c0_6 = arith.constant 0 : index
    %4 = vector.load %arg3[%c0_5, %c0_6] : memref<128x384xbf16, #tpu.memory_space<vmem>>, vector<128x384xbf16>
    %cst = arith.constant dense<0.000000e+00> : vector<32x384xf32>
    %5 = tpu.matmul %3, %4, %cst {dimension_numbers = #tpu.dot_dimension_numbers<[1], [0], [0], [1], [0, 0, 1, 1], [], []>} : vector<32x128xbf16>, vector<128x384xbf16>, vector<32x384xf32> -> vector<32x384xf32>
    %6 = vector.extract_strided_slice %5 {offsets = [0, 0], sizes = [32, 128], strides = [1, 1]} : vector<32x384xf32> to vector<32x128xf32>
    %7 = vector.extract_strided_slice %5 {offsets = [0, 128], sizes = [32, 128], strides = [1, 1]} : vector<32x384xf32> to vector<32x128xf32>
    %8 = vector.extract_strided_slice %5 {offsets = [0, 256], sizes = [32, 128], strides = [1, 1]} : vector<32x384xf32> to vector<32x128xf32>
    %9 = vector.shape_cast %6 : vector<32x128xf32> to vector<1x32x128xf32>
    %10 = vector.shape_cast %2 : vector<8x128xf32> to vector<8x1x128xf32>
    %11 = vector.broadcast %9 : vector<1x32x128xf32> to vector<8x32x128xf32>
    %12 = vector.broadcast %10 : vector<8x1x128xf32> to vector<8x32x128xf32>
    %13 = arith.mulf %11, %12 : vector<8x32x128xf32>
    %14 = vector.shape_cast %13 : vector<8x32x128xf32> to vector<256x128xf32>
    %15 = arith.truncf %14 : vector<256x128xf32> to vector<256x128xbf16>
    %16 = arith.truncf %7 : vector<32x128xf32> to vector<32x128xbf16>
    %cst_7 = arith.constant dense<0.000000e+00> : vector<256x32xf32>
    %17 = tpu.matmul %15, %16, %cst_7 {dimension_numbers = #tpu.dot_dimension_numbers<[1], [1], [0], [0], [0, 0, 1, 0], [], []>} : vector<256x128xbf16>, vector<32x128xbf16>, vector<256x32xf32> -> vector<256x32xf32>
    %18 = vector.shape_cast %17 : vector<256x32xf32> to vector<8x32x32xf32>
    %19 = vector.shape_cast %1 : vector<32x32xf32> to vector<1x32x32xf32>
    %20 = vector.broadcast %19 : vector<1x32x32xf32> to vector<8x32x32xf32>
    %21 = arith.addf %18, %20 : vector<8x32x32xf32>
    %cst_8 = arith.constant dense<0xFF800000> : vector<8x32xf32>
    %22 = vector.multi_reduction <maximumf>, %21, %cst_8 [2] : vector<8x32x32xf32> to vector<8x32xf32>
    %23 = vector.shape_cast %22 : vector<8x32xf32> to vector<8x32x1xf32>
    %24 = vector.broadcast %23 : vector<8x32x1xf32> to vector<8x32x32xf32>
    %25 = arith.subf %21, %24 : vector<8x32x32xf32>
    %26 = math.exp %25 : vector<8x32x32xf32>
    %cst_9 = arith.constant dense<0.000000e+00> : vector<8x32xf32>
    %27 = vector.multi_reduction <add>, %26, %cst_9 [2] : vector<8x32x32xf32> to vector<8x32xf32>
    %28 = vector.shape_cast %27 : vector<8x32xf32> to vector<8x32x1xf32>
    %29 = tpu.reciprocal %28 {approx = true} : vector<8x32x1xf32> -> vector<8x32x1xf32>
    %30 = vector.broadcast %29 : vector<8x32x1xf32> to vector<8x32x32xf32>
    %31 = arith.mulf %26, %30 : vector<8x32x32xf32>
    %32 = arith.truncf %31 : vector<8x32x32xf32> to vector<8x32x32xbf16>
    %33 = vector.shape_cast %8 : vector<32x128xf32> to vector<1x32x128xf32>
    %34 = vector.shape_cast %2 : vector<8x128xf32> to vector<8x1x128xf32>
    %35 = vector.broadcast %33 : vector<1x32x128xf32> to vector<8x32x128xf32>
    %36 = vector.broadcast %34 : vector<8x1x128xf32> to vector<8x32x128xf32>
    %37 = arith.mulf %35, %36 : vector<8x32x128xf32>
    %38 = arith.truncf %37 : vector<8x32x128xf32> to vector<8x32x128xbf16>
    %cst_10 = arith.constant 0.000000e+00 : f32
    %39 = vector.broadcast %cst_10 : f32 to vector<32x128xf32>
    %40 = vector.extract_strided_slice %32 {offsets = [0, 0, 0], sizes = [1, 32, 32], strides = [1, 1, 1]} : vector<8x32x32xbf16> to vector<1x32x32xbf16>
    %41 = vector.shape_cast %40 : vector<1x32x32xbf16> to vector<32x32xbf16>
    %42 = vector.extract_strided_slice %38 {offsets = [0, 0, 0], sizes = [1, 32, 128], strides = [1, 1, 1]} : vector<8x32x128xbf16> to vector<1x32x128xbf16>
    %43 = vector.shape_cast %42 : vector<1x32x128xbf16> to vector<32x128xbf16>
    %cst_11 = arith.constant dense<0.000000e+00> : vector<32x128xf32>
    %44 = tpu.matmul %41, %43, %cst_11 {dimension_numbers = #tpu.dot_dimension_numbers<[1], [0], [0], [1], [0, 0, 1, 1], [], []>} : vector<32x32xbf16>, vector<32x128xbf16>, vector<32x128xf32> -> vector<32x128xf32>
    %45 = arith.addf %39, %44 : vector<32x128xf32>
    %46 = vector.extract_strided_slice %32 {offsets = [1, 0, 0], sizes = [1, 32, 32], strides = [1, 1, 1]} : vector<8x32x32xbf16> to vector<1x32x32xbf16>
    %47 = vector.shape_cast %46 : vector<1x32x32xbf16> to vector<32x32xbf16>
    %48 = vector.extract_strided_slice %38 {offsets = [1, 0, 0], sizes = [1, 32, 128], strides = [1, 1, 1]} : vector<8x32x128xbf16> to vector<1x32x128xbf16>
    %49 = vector.shape_cast %48 : vector<1x32x128xbf16> to vector<32x128xbf16>
    %cst_12 = arith.constant dense<0.000000e+00> : vector<32x128xf32>
    %50 = tpu.matmul %47, %49, %cst_12 {dimension_numbers = #tpu.dot_dimension_numbers<[1], [0], [0], [1], [0, 0, 1, 1], [], []>} : vector<32x32xbf16>, vector<32x128xbf16>, vector<32x128xf32> -> vector<32x128xf32>
    %51 = arith.addf %45, %50 : vector<32x128xf32>
    %52 = vector.extract_strided_slice %32 {offsets = [2, 0, 0], sizes = [1, 32, 32], strides = [1, 1, 1]} : vector<8x32x32xbf16> to vector<1x32x32xbf16>
    %53 = vector.shape_cast %52 : vector<1x32x32xbf16> to vector<32x32xbf16>
    %54 = vector.extract_strided_slice %38 {offsets = [2, 0, 0], sizes = [1, 32, 128], strides = [1, 1, 1]} : vector<8x32x128xbf16> to vector<1x32x128xbf16>
    %55 = vector.shape_cast %54 : vector<1x32x128xbf16> to vector<32x128xbf16>
    %cst_13 = arith.constant dense<0.000000e+00> : vector<32x128xf32>
    %56 = tpu.matmul %53, %55, %cst_13 {dimension_numbers = #tpu.dot_dimension_numbers<[1], [0], [0], [1], [0, 0, 1, 1], [], []>} : vector<32x32xbf16>, vector<32x128xbf16>, vector<32x128xf32> -> vector<32x128xf32>
    %57 = arith.addf %51, %56 : vector<32x128xf32>
    %58 = vector.extract_strided_slice %32 {offsets = [3, 0, 0], sizes = [1, 32, 32], strides = [1, 1, 1]} : vector<8x32x32xbf16> to vector<1x32x32xbf16>
    %59 = vector.shape_cast %58 : vector<1x32x32xbf16> to vector<32x32xbf16>
    %60 = vector.extract_strided_slice %38 {offsets = [3, 0, 0], sizes = [1, 32, 128], strides = [1, 1, 1]} : vector<8x32x128xbf16> to vector<1x32x128xbf16>
    %61 = vector.shape_cast %60 : vector<1x32x128xbf16> to vector<32x128xbf16>
    %cst_14 = arith.constant dense<0.000000e+00> : vector<32x128xf32>
    %62 = tpu.matmul %59, %61, %cst_14 {dimension_numbers = #tpu.dot_dimension_numbers<[1], [0], [0], [1], [0, 0, 1, 1], [], []>} : vector<32x32xbf16>, vector<32x128xbf16>, vector<32x128xf32> -> vector<32x128xf32>
    %63 = arith.addf %57, %62 : vector<32x128xf32>
    %64 = vector.extract_strided_slice %32 {offsets = [4, 0, 0], sizes = [1, 32, 32], strides = [1, 1, 1]} : vector<8x32x32xbf16> to vector<1x32x32xbf16>
    %65 = vector.shape_cast %64 : vector<1x32x32xbf16> to vector<32x32xbf16>
    %66 = vector.extract_strided_slice %38 {offsets = [4, 0, 0], sizes = [1, 32, 128], strides = [1, 1, 1]} : vector<8x32x128xbf16> to vector<1x32x128xbf16>
    %67 = vector.shape_cast %66 : vector<1x32x128xbf16> to vector<32x128xbf16>
    %cst_15 = arith.constant dense<0.000000e+00> : vector<32x128xf32>
    %68 = tpu.matmul %65, %67, %cst_15 {dimension_numbers = #tpu.dot_dimension_numbers<[1], [0], [0], [1], [0, 0, 1, 1], [], []>} : vector<32x32xbf16>, vector<32x128xbf16>, vector<32x128xf32> -> vector<32x128xf32>
    %69 = arith.addf %63, %68 : vector<32x128xf32>
    %70 = vector.extract_strided_slice %32 {offsets = [5, 0, 0], sizes = [1, 32, 32], strides = [1, 1, 1]} : vector<8x32x32xbf16> to vector<1x32x32xbf16>
    %71 = vector.shape_cast %70 : vector<1x32x32xbf16> to vector<32x32xbf16>
    %72 = vector.extract_strided_slice %38 {offsets = [5, 0, 0], sizes = [1, 32, 128], strides = [1, 1, 1]} : vector<8x32x128xbf16> to vector<1x32x128xbf16>
    %73 = vector.shape_cast %72 : vector<1x32x128xbf16> to vector<32x128xbf16>
    %cst_16 = arith.constant dense<0.000000e+00> : vector<32x128xf32>
    %74 = tpu.matmul %71, %73, %cst_16 {dimension_numbers = #tpu.dot_dimension_numbers<[1], [0], [0], [1], [0, 0, 1, 1], [], []>} : vector<32x32xbf16>, vector<32x128xbf16>, vector<32x128xf32> -> vector<32x128xf32>
    %75 = arith.addf %69, %74 : vector<32x128xf32>
    %76 = vector.extract_strided_slice %32 {offsets = [6, 0, 0], sizes = [1, 32, 32], strides = [1, 1, 1]} : vector<8x32x32xbf16> to vector<1x32x32xbf16>
    %77 = vector.shape_cast %76 : vector<1x32x32xbf16> to vector<32x32xbf16>
    %78 = vector.extract_strided_slice %38 {offsets = [6, 0, 0], sizes = [1, 32, 128], strides = [1, 1, 1]} : vector<8x32x128xbf16> to vector<1x32x128xbf16>
    %79 = vector.shape_cast %78 : vector<1x32x128xbf16> to vector<32x128xbf16>
    %cst_17 = arith.constant dense<0.000000e+00> : vector<32x128xf32>
    %80 = tpu.matmul %77, %79, %cst_17 {dimension_numbers = #tpu.dot_dimension_numbers<[1], [0], [0], [1], [0, 0, 1, 1], [], []>} : vector<32x32xbf16>, vector<32x128xbf16>, vector<32x128xf32> -> vector<32x128xf32>
    %81 = arith.addf %75, %80 : vector<32x128xf32>
    %82 = vector.extract_strided_slice %32 {offsets = [7, 0, 0], sizes = [1, 32, 32], strides = [1, 1, 1]} : vector<8x32x32xbf16> to vector<1x32x32xbf16>
    %83 = vector.shape_cast %82 : vector<1x32x32xbf16> to vector<32x32xbf16>
    %84 = vector.extract_strided_slice %38 {offsets = [7, 0, 0], sizes = [1, 32, 128], strides = [1, 1, 1]} : vector<8x32x128xbf16> to vector<1x32x128xbf16>
    %85 = vector.shape_cast %84 : vector<1x32x128xbf16> to vector<32x128xbf16>
    %cst_18 = arith.constant dense<0.000000e+00> : vector<32x128xf32>
    %86 = tpu.matmul %83, %85, %cst_18 {dimension_numbers = #tpu.dot_dimension_numbers<[1], [0], [0], [1], [0, 0, 1, 1], [], []>} : vector<32x32xbf16>, vector<32x128xbf16>, vector<32x128xf32> -> vector<32x128xf32>
    %87 = arith.addf %81, %86 : vector<32x128xf32>
    %88 = arith.truncf %87 : vector<32x128xf32> to vector<32x128xbf16>
    %c0_19 = arith.constant 0 : index
    %c0_20 = arith.constant 0 : index
    %89 = vector.load %arg4[%c0_19, %c0_20] : memref<128x128xbf16, #tpu.memory_space<vmem>>, vector<128x128xbf16>
    %cst_21 = arith.constant dense<0.000000e+00> : vector<32x128xf32>
    %90 = tpu.matmul %88, %89, %cst_21 {dimension_numbers = #tpu.dot_dimension_numbers<[1], [0], [0], [1], [0, 0, 1, 1], [], []>} : vector<32x128xbf16>, vector<128x128xbf16>, vector<32x128xf32> -> vector<32x128xf32>
    %c0_22 = arith.constant 0 : index
    %c0_23 = arith.constant 0 : index
    %91 = vector.load %arg5[%c0_22, %c0_23] : memref<1x128xf32, #tpu.memory_space<vmem>>, vector<1x128xf32>
    %92 = vector.broadcast %91 : vector<1x128xf32> to vector<32x128xf32>
    %93 = arith.addf %90, %92 : vector<32x128xf32>
    %94 = arith.addf %93, %0 : vector<32x128xf32>
    %cst_24 = arith.constant dense<0.000000e+00> : vector<32xf32>
    %95 = vector.multi_reduction <add>, %94, %cst_24 [1] : vector<32x128xf32> to vector<32xf32>
    %96 = vector.shape_cast %95 : vector<32xf32> to vector<32x1xf32>
    %cst_25 = arith.constant 1.280000e+02 : f32
    %97 = vector.broadcast %cst_25 : f32 to vector<32x1xf32>
    %98 = arith.divf %96, %97 : vector<32x1xf32>
    %99 = vector.broadcast %98 : vector<32x1xf32> to vector<32x128xf32>
    %100 = arith.subf %94, %99 : vector<32x128xf32>
    %101 = arith.mulf %100, %100 : vector<32x128xf32>
    %cst_26 = arith.constant dense<0.000000e+00> : vector<32xf32>
    %102 = vector.multi_reduction <add>, %101, %cst_26 [1] : vector<32x128xf32> to vector<32xf32>
    %103 = vector.shape_cast %102 : vector<32xf32> to vector<32x1xf32>
    %cst_27 = arith.constant 0.00787401571 : f32
    %104 = vector.broadcast %cst_27 : f32 to vector<32x1xf32>
    %105 = arith.mulf %103, %104 : vector<32x1xf32>
    %106 = tpu.reciprocal %105 {approx = true} : vector<32x1xf32> -> vector<32x1xf32>
    %107 = vector.broadcast %106 : vector<32x1xf32> to vector<32x128xf32>
    %108 = arith.mulf %100, %107 : vector<32x128xf32>
    %109 = arith.truncf %108 : vector<32x128xf32> to vector<32x128xbf16>
    %c0_28 = arith.constant 0 : index
    %c0_29 = arith.constant 0 : index
    %110 = vector.load %arg6[%c0_28, %c0_29] : memref<128x512xbf16, #tpu.memory_space<vmem>>, vector<128x512xbf16>
    %cst_30 = arith.constant dense<0.000000e+00> : vector<32x512xf32>
    %111 = tpu.matmul %109, %110, %cst_30 {dimension_numbers = #tpu.dot_dimension_numbers<[1], [0], [0], [1], [0, 0, 1, 1], [], []>} : vector<32x128xbf16>, vector<128x512xbf16>, vector<32x512xf32> -> vector<32x512xf32>
    %c0_31 = arith.constant 0 : index
    %c0_32 = arith.constant 0 : index
    %112 = vector.load %arg7[%c0_31, %c0_32] : memref<1x512xf32, #tpu.memory_space<vmem>>, vector<1x512xf32>
    %113 = vector.broadcast %112 : vector<1x512xf32> to vector<32x512xf32>
    %114 = arith.addf %111, %113 : vector<32x512xf32>
    %cst_33 = arith.constant 0.000000e+00 : f32
    %115 = vector.broadcast %cst_33 : f32 to vector<32x512xf32>
    %116 = arith.maximumf %114, %115 : vector<32x512xf32>
    %117 = arith.truncf %116 : vector<32x512xf32> to vector<32x512xbf16>
    %c0_34 = arith.constant 0 : index
    %c0_35 = arith.constant 0 : index
    %118 = vector.load %arg8[%c0_34, %c0_35] : memref<512x128xbf16, #tpu.memory_space<vmem>>, vector<512x128xbf16>
    %cst_36 = arith.constant dense<0.000000e+00> : vector<32x128xf32>
    %119 = tpu.matmul %117, %118, %cst_36 {dimension_numbers = #tpu.dot_dimension_numbers<[1], [0], [0], [1], [0, 0, 1, 1], [], []>} : vector<32x512xbf16>, vector<512x128xbf16>, vector<32x128xf32> -> vector<32x128xf32>
    %c0_37 = arith.constant 0 : index
    %c0_38 = arith.constant 0 : index
    %120 = vector.load %arg9[%c0_37, %c0_38] : memref<1x128xf32, #tpu.memory_space<vmem>>, vector<1x128xf32>
    %121 = vector.broadcast %120 : vector<1x128xf32> to vector<32x128xf32>
    %122 = arith.addf %119, %121 : vector<32x128xf32>
    %123 = arith.addf %122, %108 : vector<32x128xf32>
    %cst_39 = arith.constant dense<0.000000e+00> : vector<32xf32>
    %124 = vector.multi_reduction <add>, %123, %cst_39 [1] : vector<32x128xf32> to vector<32xf32>
    %125 = vector.shape_cast %124 : vector<32xf32> to vector<32x1xf32>
    %cst_40 = arith.constant 1.280000e+02 : f32
    %126 = vector.broadcast %cst_40 : f32 to vector<32x1xf32>
    %127 = arith.divf %125, %126 : vector<32x1xf32>
    %128 = vector.broadcast %127 : vector<32x1xf32> to vector<32x128xf32>
    %129 = arith.subf %123, %128 : vector<32x128xf32>
    %130 = arith.mulf %129, %129 : vector<32x128xf32>
    %cst_41 = arith.constant dense<0.000000e+00> : vector<32xf32>
    %131 = vector.multi_reduction <add>, %130, %cst_41 [1] : vector<32x128xf32> to vector<32xf32>
    %132 = vector.shape_cast %131 : vector<32xf32> to vector<32x1xf32>
    %cst_42 = arith.constant 0.00787401571 : f32
    %133 = vector.broadcast %cst_42 : f32 to vector<32x1xf32>
    %134 = arith.mulf %132, %133 : vector<32x1xf32>
    %135 = tpu.reciprocal %134 {approx = true} : vector<32x1xf32> -> vector<32x1xf32>
    %136 = vector.broadcast %135 : vector<32x1xf32> to vector<32x128xf32>
    %137 = arith.mulf %129, %136 : vector<32x128xf32>
    %c0_43 = arith.constant 0 : index
    %c0_44 = arith.constant 0 : index
    %138 = vector.load %arg10[%c0_43, %c0_44] : memref<32x128xf32, #tpu.memory_space<vmem>>, vector<32x128xf32>
    tpu.vector_store %arg10[%c0_43, %c0_44], %137 {strides = array<i32>} : memref<32x128xf32, #tpu.memory_space<vmem>>, vector<32x128xf32>,
    return
  }
}

</mosaic_0001>

<llo_original>
// kernel: tpu_custom_call.1
$region0: #{tpu_custom_call.1}
  #allocation0 [shape = 'u32[]', space=smem, size = 0x4, offset = 0x4, fixed_abs, tag = 'smem constant byte address 0x4 - core index']
  #allocation1 [shape = 'u32[144,128]{1,0:T(1,128)}', space=vmem, size = 0x12000, scoped, tag = 'internal scratch']
  %s0 = inlined_call_operand.hbm [shape: f32[32,128], index: 0, kind: input, shape index: {}]
  %s1 = inlined_call_operand.hbm [shape: f32[32,32], index: 1, kind: input, shape index: {}]
  %s2 = inlined_call_operand.hbm [shape: f32[8,128], index: 2, kind: input, shape index: {}]
  %s3 = inlined_call_operand.hbm [shape: bf16[128,384], index: 3, kind: input, shape index: {}]
  %s4 = inlined_call_operand.hbm [shape: bf16[128,128], index: 4, kind: input, shape index: {}]
  %s5 = inlined_call_operand.vmem [shape: f32[1,128], index: 5, kind: input, shape index: {}]
  %s6 = inlined_call_operand.hbm [shape: bf16[128,512], index: 6, kind: input, shape index: {}]
  %s7 = inlined_call_operand.vmem [shape: f32[1,512], index: 7, kind: input, shape index: {}]
  %s8 = inlined_call_operand.hbm [shape: bf16[512,128], index: 8, kind: input, shape index: {}]
  %s9 = inlined_call_operand.vmem [shape: f32[1,128], index: 9, kind: input, shape index: {}]
  %s10 = inlined_call_operand.hbm [shape: f32[32,128], index: 10, kind: output, shape index: {}]
  %s11 = sld [smem:[#allocation0]]
  $region78: #{tpu_custom_call.1} parent=0
    _
  %s13 = ssub.s32 1, %s11
  %s14 = scalar_select 0, %s13, %s11
  $region1: #{tpu_custom_call.1} parent=0
    #allocation2 [shape = 'u8[16384]{0}', space=vmem, size = 0x4000, scoped, tag = 'input window, operand 0, single buffered']
    #allocation3 [shape = 's32[1]{0}', space=sflag, size = 0x4, scoped, tag = 'scoped memory for tpu_custom_call.1']
    #allocation4 [shape = 's32[1]{0}', space=sflag, size = 0x4, scoped, tag = 'scoped memory for tpu_custom_call.1']
    #allocation5 [shape = 'u8[16384]{0}', space=vmem, size = 0x4000, scoped, tag = 'input window, operand 1, single buffered']
    #allocation6 [shape = 's32[1]{0}', space=sflag, size = 0x4, scoped, tag = 'scoped memory for tpu_custom_call.1']
    #allocation7 [shape = 'u8[4096]{0}', space=vmem, size = 0x1000, scoped, tag = 'input window, operand 2, single buffered']
    #allocation8 [shape = 'u8[98304]{0}', space=vmem, size = 0x18000, scoped, tag = 'input window, operand 3, single buffered']
    #allocation9 [shape = 's32[1]{0}', space=sflag, size = 0x4, scoped, tag = 'scoped memory for tpu_custom_call.1']
    #allocation10 [shape = 'u8[32768]{0}', space=vmem, size = 0x8000, scoped, tag = 'input window, operand 4, single buffered']
    #allocation11 [shape = 'u8[131072]{0}', space=vmem, size = 0x20000, scoped, tag = 'input window, operand 6, single buffered']
    #allocation12 [shape = 's32[1]{0}', space=sflag, size = 0x4, scoped, tag = 'scoped memory for tpu_custom_call.1']
    #allocation13 [shape = 'u8[131072]{0}', space=vmem, size = 0x20000, scoped, tag = 'input window, operand 8, single buffered']
    #allocation14 [shape = 'u8[16384]{0}', space=vmem, size = 0x4000, scoped, tag = 'output window, operand 0, single buffered']
    %15 = vsyncpa [#allocation3], 0
    %16 = vsyncpa [#allocation6], 0
    %17 = vsyncpa [#allocation9], 0
    %18 = vsyncpa [#allocation12], 0
    %19 = vsyncpa [#allocation4], 0
    // Predicated region
    $region2: #{tpu_custom_call.1} parent=1 // pred_check
      _
    $region3: #{tpu_custom_call.1} parent=1 // pred_check_branch
      %21 = sbr.rel (0) target = $region5
    $region4: #{tpu_custom_call.1} parent=1 // pred_region
      %s23 = ssub.s32 512, 512
      %24 = vsyncadd [#allocation3], %s23
      %s25 = sshll.u32 [#allocation2], 4
      %s26 = int_to_ptr.vmem [resolvable:$true] %s25
      %31 = dma.hbm_to_vmem [thread:$0]  %s0, 512, %s26, [#allocation3], 128, 128, 8
    $region5: #{tpu_custom_call.1} parent=1 // pred_fallthru
      _
    // Predicated region
    $region6: #{tpu_custom_call.1} parent=1 // pred_check
      _
    $region7: #{tpu_custom_call.1} parent=1 // pred_check_branch
      %33 = sbr.rel (0) target = $region9
    $region8: #{tpu_custom_call.1} parent=1 // pred_region
      %s35 = ssub.s32 512, 512
      %36 = vsyncadd [#allocation6], %s35
      %s37 = sshll.u32 [#allocation5], 4
      %s38 = int_to_ptr.vmem [resolvable:$true] %s37
      %43 = dma.hbm_to_vmem [thread:$0]  %s1, 512, %s38, [#allocation6], 128, 128, 8
    $region9: #{tpu_custom_call.1} parent=1 // pred_fallthru
      _
    // Predicated region
    $region10: #{tpu_custom_call.1} parent=1 // pred_check
      _
    $region11: #{tpu_custom_call.1} parent=1 // pred_check_branch
      %45 = sbr.rel (0) target = $region13
    $region12: #{tpu_custom_call.1} parent=1 // pred_region
      %s47 = ssub.s32 128, 128
      %48 = vsyncadd [#allocation6], %s47
      %s50 = sshll.u32 [#allocation7], 4
      %s51 = int_to_ptr.vmem [resolvable:$true] %s50
      %53 = dma.hbm_to_vmem [thread:$0]  %s2, 128, %s51, [#allocation6]
    $region13: #{tpu_custom_call.1} parent=1 // pred_fallthru
      _
    // Predicated region
    $region14: #{tpu_custom_call.1} parent=1 // pred_check
      _
    $region15: #{tpu_custom_call.1} parent=1 // pred_check_branch
      %55 = sbr.rel (0) target = $region17
    $region16: #{tpu_custom_call.1} parent=1 // pred_region
      %s57 = ssub.s32 3072, 3072
      %58 = vsyncadd [#allocation9], %s57
      %s59 = sshll.u32 [#allocation8], 4
      %s60 = int_to_ptr.vmem [resolvable:$true] %s59
      %65 = dma.hbm_to_vmem [thread:$0]  %s3, 3072, %s60, [#allocation9], 192, 192, 12
    $region17: #{tpu_custom_call.1} parent=1 // pred_fallthru
      _
    // Predicated region
    $region18: #{tpu_custom_call.1} parent=1 // pred_check
      _
    $region19: #{tpu_custom_call.1} parent=1 // pred_check_branch
      %67 = sbr.rel (0) target = $region21
    $region20: #{tpu_custom_call.1} parent=1 // pred_region
      %s69 = ssub.s32 1024, 1024
      %70 = vsyncadd [#allocation9], %s69
      %s71 = sshll.u32 [#allocation10], 4
      %s72 = int_to_ptr.vmem [resolvable:$true] %s71
      %77 = dma.hbm_to_vmem [thread:$0]  %s4, 1024, %s72, [#allocation9], 64, 64, 4
    $region21: #{tpu_custom_call.1} parent=1 // pred_fallthru
      _
    // Predicated region
    $region22: #{tpu_custom_call.1} parent=1 // pred_check
      _
    $region23: #{tpu_custom_call.1} parent=1 // pred_check_branch
      %79 = sbr.rel (0) target = $region25
    $region24: #{tpu_custom_call.1} parent=1 // pred_region
      _
    $region25: #{tpu_custom_call.1} parent=1 // pred_fallthru
      _
    // Predicated region
    $region26: #{tpu_custom_call.1} parent=1 // pred_check
      _
    $region27: #{tpu_custom_call.1} parent=1 // pred_check_branch
      %81 = sbr.rel (0) target = $region29
    $region28: #{tpu_custom_call.1} parent=1 // pred_region
      %s83 = ssub.s32 4096, 4096
      %84 = vsyncadd [#allocation12], %s83
      %s85 = sshll.u32 [#allocation11], 4
      %s86 = int_to_ptr.vmem [resolvable:$true] %s85
      %91 = dma.hbm_to_vmem [thread:$0]  %s6, 4096, %s86, [#allocation12], 256, 256, 16
    $region29: #{tpu_custom_call.1} parent=1 // pred_fallthru
      _
    // Predicated region
    $region30: #{tpu_custom_call.1} parent=1 // pred_check
      _
    $region31: #{tpu_custom_call.1} parent=1 // pred_check_branch
      %93 = sbr.rel (0) target = $region33
    $region32: #{tpu_custom_call.1} parent=1 // pred_region
      _
    $region33: #{tpu_custom_call.1} parent=1 // pred_fallthru
      _
    // Predicated region
    $region34: #{tpu_custom_call.1} parent=1 // pred_check
      _
    $region35: #{tpu_custom_call.1} parent=1 // pred_check_branch
      %95 = sbr.rel (0) target = $region37
    $region36: #{tpu_custom_call.1} parent=1 // pred_region
      %s97 = ssub.s32 4096, 4096
      %98 = vsyncadd [#allocation12], %s97
      %s99 = sshll.u32 [#allocation13], 4
      %s100 = int_to_ptr.vmem [resolvable:$true] %s99
      %105 = dma.hbm_to_vmem [thread:$0]  %s8, 4096, %s100, [#allocation12], 64, 64, 4
    $region37: #{tpu_custom_call.1} parent=1 // pred_fallthru
      _
    // Predicated region
    $region38: #{tpu_custom_call.1} parent=1 // pred_check
      _
    $region39: #{tpu_custom_call.1} parent=1 // pred_check_branch
      %107 = sbr.rel (0) target = $region41
    $region40: #{tpu_custom_call.1} parent=1 // pred_region
      _
    $region41: #{tpu_custom_call.1} parent=1 // pred_fallthru
      _
    // Predicated region
    $region42: #{tpu_custom_call.1} parent=1 // pred_check
      _
    $region43: #{tpu_custom_call.1} parent=1 // pred_check_branch
      %109 = sbr.rel (0) target = $region45
    $region44: #{tpu_custom_call.1} parent=1 // pred_region
      %110 = dma.done [#allocation3], 512
    $region45: #{tpu_custom_call.1} parent=1 // pred_fallthru
      _
    // Predicated region
    $region46: #{tpu_custom_call.1} parent=1 // pred_check
      _
    $region47: #{tpu_custom_call.1} parent=1 // pred_check_branch
      %112 = sbr.rel (0) target = $region49
    $region48: #{tpu_custom_call.1} parent=1 // pred_region
      %113 = dma.done [#allocation6], 512
    $region49: #{tpu_custom_call.1} parent=1 // pred_fallthru
      _
    // Predicated region
    $region50: #{tpu_custom_call.1} parent=1 // pred_check
      _
    $region51: #{tpu_custom_call.1} parent=1 // pred_check_branch
      %115 = sbr.rel (0) target = $region53
    $region52: #{tpu_custom_call.1} parent=1 // pred_region
      %116 = dma.done [#allocation6], 128
    $region53: #{tpu_custom_call.1} parent=1 // pred_fallthru
      _
    // Predicated region
    $region54: #{tpu_custom_call.1} parent=1 // pred_check
      _
    $region55: #{tpu_custom_call.1} parent=1 // pred_check_branch
      %118 = sbr.rel (0) target = $region57
    $region56: #{tpu_custom_call.1} parent=1 // pred_region
      %119 = dma.done [#allocation9], 3072
    $region57: #{tpu_custom_call.1} parent=1 // pred_fallthru
      _
    // Predicated region
    $region58: #{tpu_custom_call.1} parent=1 // pred_check
      _
    $region59: #{tpu_custom_call.1} parent=1 // pred_check_branch
      %121 = sbr.rel (0) target = $region61
    $region60: #{tpu_custom_call.1} parent=1 // pred_region
      %122 = dma.done [#allocation9], 1024
    $region61: #{tpu_custom_call.1} parent=1 // pred_fallthru
      _
    // Predicated region
    $region62: #{tpu_custom_call.1} parent=1 // pred_check
      _
    $region63: #{tpu_custom_call.1} parent=1 // pred_check_branch
      %124 = sbr.rel (0) target = $region65
    $region64: #{tpu_custom_call.1} parent=1 // pred_region
      %125 = dma.done [#allocation12], 4096
    $region65: #{tpu_custom_call.1} parent=1 // pred_fallthru
      _
    // Predicated region
    $region66: #{tpu_custom_call.1} parent=1 // pred_check
      _
    $region67: #{tpu_custom_call.1} parent=1 // pred_check_branch
      %127 = sbr.rel (0) target = $region69
    $region68: #{tpu_custom_call.1} parent=1 // pred_region
      %128 = dma.done [#allocation12], 4096
    $region69: #{tpu_custom_call.1} parent=1 // pred_fallthru
      _
    %v130 = vld [vmem:[#allocation2] sm:$0xff]
    %v131 = vld [vmem:[#allocation2 + $0x8] sm:$0xff]
    %v132 = vld [vmem:[#allocation2 + $0x10] sm:$0xff]
    %v133 = vld [vmem:[#allocation2 + $0x18] sm:$0xff]
    %v134 = vld [vmem:[#allocation5] sm:$0xff]
    %v135 = vld [vmem:[#allocation5 + $0x8] sm:$0xff]
    %v136 = vld [vmem:[#allocation5 + $0x10] sm:$0xff]
    %v137 = vld [vmem:[#allocation5 + $0x18] sm:$0xff]
    %v138 = vld [vmem:[#allocation7] sm:$0xff]
    %v139 = vpack.c.bf16 %v131, %v130
    %v140 = vpack.c.bf16 %v133, %v132
    %v141 = vld [vmem:[#allocation8] sm:$0xff]
    %v142 = vld [vmem:[#allocation8 + $0x8] sm:$0xf]
    %v143 = vld [vmem:[#allocation8 + $0xc] sm:$0xff]
    %v144 = vld [vmem:[#allocation8 + $0x14] sm:$0xf]
    %v145 = vld [vmem:[#allocation8 + $0x18] sm:$0xff]
    %v146 = vld [vmem:[#allocation8 + $0x20] sm:$0xf]
    %v147 = vld [vmem:[#allocation8 + $0x24] sm:$0xff]
    %v148 = vld [vmem:[#allocation8 + $0x2c] sm:$0xf]
    %v149 = vld [vmem:[#allocation8 + $0x30] sm:$0xff]
    %v150 = vld [vmem:[#allocation8 + $0x38] sm:$0xf]
    %v151 = vld [vmem:[#allocation8 + $0x3c] sm:$0xff]
    %v152 = vld [vmem:[#allocation8 + $0x44] sm:$0xf]
    %v153 = vld [vmem:[#allocation8 + $0x48] sm:$0xff]
    %v154 = vld [vmem:[#allocation8 + $0x50] sm:$0xf]
    %v155 = vld [vmem:[#allocation8 + $0x54] sm:$0xff]
    %v156 = vld [vmem:[#allocation8 + $0x5c] sm:$0xf]
    %v157 = vld [vmem:[#allocation8 + $0x60] sm:$0xff]
    %v158 = vld [vmem:[#allocation8 + $0x68] sm:$0xf]
    %v159 = vld [vmem:[#allocation8 + $0x6c] sm:$0xff]
    %v160 = vld [vmem:[#allocation8 + $0x74] sm:$0xf]
    %v161 = vld [vmem:[#allocation8 + $0x78] sm:$0xff]
    %v162 = vld [vmem:[#allocation8 + $0x80] sm:$0xf]
    %v163 = vld [vmem:[#allocation8 + $0x84] sm:$0xff]
    %v164 = vld [vmem:[#allocation8 + $0x8c] sm:$0xf]
    %v165 = vld [vmem:[#allocation8 + $0x90] sm:$0xff]
    %v166 = vld [vmem:[#allocation8 + $0x98] sm:$0xf]
    %v167 = vld [vmem:[#allocation8 + $0x9c] sm:$0xff]
    %v168 = vld [vmem:[#allocation8 + $0xa4] sm:$0xf]
    %v169 = vld [vmem:[#allocation8 + $0xa8] sm:$0xff]
    %v170 = vld [vmem:[#allocation8 + $0xb0] sm:$0xf]
    %v171 = vld [vmem:[#allocation8 + $0xb4] sm:$0xff]
    %v172 = vld [vmem:[#allocation8 + $0xbc] sm:$0xf]
    %v205 = vunpack.c.l.b16 %v141
    %v206 = vunpack.c.h.b16 %v141
    %v207 = vunpack.c.l.b16 %v142
    %v208 = vunpack.c.l.b16 %v143
    %v209 = vunpack.c.h.b16 %v143
    %v210 = vunpack.c.l.b16 %v144
    %v211 = vunpack.c.l.b16 %v145
    %v212 = vunpack.c.h.b16 %v145
    %v213 = vunpack.c.l.b16 %v146
    %v214 = vunpack.c.l.b16 %v147
    %v215 = vunpack.c.h.b16 %v147
    %v216 = vunpack.c.l.b16 %v148
    %v217 = vunpack.c.l.b16 %v149
    %v218 = vunpack.c.h.b16 %v149
    %v219 = vunpack.c.l.b16 %v150
    %v220 = vunpack.c.l.b16 %v151
    %v221 = vunpack.c.h.b16 %v151
    %v222 = vunpack.c.l.b16 %v152
    %v223 = vunpack.c.l.b16 %v153
    %v224 = vunpack.c.h.b16 %v153
    %v225 = vunpack.c.l.b16 %v154
    %v226 = vunpack.c.l.b16 %v155
    %v227 = vunpack.c.h.b16 %v155
    %v228 = vunpack.c.l.b16 %v156
    %v229 = vunpack.c.l.b16 %v157
    %v230 = vunpack.c.h.b16 %v157
    %v231 = vunpack.c.l.b16 %v158
    %v232 = vunpack.c.l.b16 %v159
    %v233 = vunpack.c.h.b16 %v159
    %v234 = vunpack.c.l.b16 %v160
    %v235 = vunpack.c.l.b16 %v161
    %v236 = vunpack.c.h.b16 %v161
    %v237 = vunpack.c.l.b16 %v162
    %v238 = vunpack.c.l.b16 %v163
    %v239 = vunpack.c.h.b16 %v163
    %v240 = vunpack.c.l.b16 %v164
    %v241 = vunpack.c.l.b16 %v165
    %v242 = vunpack.c.h.b16 %v165
    %v243 = vunpack.c.l.b16 %v166
    %v244 = vunpack.c.l.b16 %v167
    %v245 = vunpack.c.h.b16 %v167
    %v246 = vunpack.c.l.b16 %v168
    %v247 = vunpack.c.l.b16 %v169
    %v248 = vunpack.c.h.b16 %v169
    %v249 = vunpack.c.l.b16 %v170
    %v250 = vunpack.c.l.b16 %v171
    %v251 = vunpack.c.h.b16 %v171
    %v252 = vunpack.c.l.b16 %v172
    %v253 = vpack.c.b16 %v208, %v205
    %v254 = vpack.c.b16 %v209, %v206
    %v255 = vpack.c.b16 %v210, %v207
    %v256 = vpack.c.b16 %v214, %v211
    %v257 = vpack.c.b16 %v215, %v212
    %v258 = vpack.c.b16 %v216, %v213
    %v259 = vpack.c.b16 %v220, %v217
    %v260 = vpack.c.b16 %v221, %v218
    %v261 = vpack.c.b16 %v222, %v219
    %v262 = vpack.c.b16 %v226, %v223
    %v263 = vpack.c.b16 %v227, %v224
    %v264 = vpack.c.b16 %v228, %v225
    %v265 = vpack.c.b16 %v232, %v229
    %v266 = vpack.c.b16 %v233, %v230
    %v267 = vpack.c.b16 %v234, %v231
    %v268 = vpack.c.b16 %v238, %v235
    %v269 = vpack.c.b16 %v239, %v236
    %v270 = vpack.c.b16 %v240, %v237
    %v271 = vpack.c.b16 %v244, %v241
    %v272 = vpack.c.b16 %v245, %v242
    %v273 = vpack.c.b16 %v246, %v243
    %v274 = vpack.c.b16 %v250, %v247
    %v275 = vpack.c.b16 %v251, %v248
    %v276 = vpack.c.b16 %v252, %v249
    %301 = vmatprep.subr.bf16.mxu0 %v254
    %302 = vmatpush1.bf16.msra.mxu0 %v253
    %303 = vmatprep.subr.bf16.mxu0 %v257
    %304 = vmatpush1.bf16.msra.mxu0 %v256
    %305 = vmatprep.subr.bf16.mxu0 %v260
    %306 = vmatpush1.bf16.msra.mxu0 %v259
    %307 = vmatprep.subr.bf16.mxu0 %v263
    %308 = vmatpush1.bf16.msra.mxu0 %v262
    %309 = vmatprep.subr.bf16.mxu0 %v266
    %310 = vmatpush1.bf16.msra.mxu0 %v265
    %311 = vmatprep.subr.bf16.mxu0 %v269
    %312 = vmatpush1.bf16.msra.mxu0 %v268
    %313 = vmatprep.subr.bf16.mxu0 %v272
    %314 = vmatpush1.bf16.msra.mxu0 %v271
    %315 = vmatprep.subr.bf16.mxu0 %v275
    %316 = vmatpush1.bf16.msra.mxu0 %v274
    %317 = vmatprep.subr.bf16.mxu0 0
    %318 = vmatpush1.bf16.msra.mxu0 0
    %319 = vmatprep.subr.bf16.mxu0 0
    %320 = vmatpush1.bf16.msra.mxu0 0
    %321 = vmatprep.subr.bf16.mxu0 0
    %322 = vmatpush1.bf16.msra.mxu0 0
    %323 = vmatprep.subr.bf16.mxu0 0
    %324 = vmatpush1.bf16.msra.mxu0 0
    %325 = vmatprep.subr.bf16.mxu0 0
    %326 = vmatpush1.bf16.msra.mxu0 0
    %327 = vmatprep.subr.bf16.mxu0 0
    %328 = vmatpush1.bf16.msra.mxu0 0
    %329 = vmatprep.subr.bf16.mxu0 0
    %330 = vmatpush1.bf16.msra.mxu0 0
    %331 = vmatprep.subr.bf16.mxu0 0
    %332 = vmatpush1.bf16.msra.mxu0 0
    %333 = vmatprep.mubr.bf16.mxu0 0
    %334 = vmatmul.mubr.bf16.gmra.mrb[0].mxu0 %v139
    %v335 = vpop.f32.mrb[0].mxu0
    %v336 = vadd.f32 0.0, %v335
    %v337 = vpop.f32.mrb[0].mxu0
    %v338 = vadd.f32 0.0, %v337
    %v339 = vpop.f32.mrb[0].mxu0
    %v340 = vadd.f32 0.0, %v339
    %v341 = vpop.f32.mrb[0].mxu0
    %v342 = vadd.f32 0.0, %v341
    %343 = vmatprep.mubr.bf16.mxu0 0
    %344 = vmatmul.mubr.bf16.gmra.mrb[0].mxu0 %v140
    %v345 = vpop.f32.mrb[0].mxu0
    %v346 = vadd.f32 0.0, %v345
    %v347 = vpop.f32.mrb[0].mxu0
    %v348 = vadd.f32 0.0, %v347
    %v349 = vpop.f32.mrb[0].mxu0
    %v350 = vadd.f32 0.0, %v349
    %v351 = vpop.f32.mrb[0].mxu0
    %v352 = vadd.f32 0.0, %v351
    %353 = vdwg.mxu0
    %354 = vmatprep.subr.bf16.mxu0 0
    %355 = vmatpush1.bf16.msra.mxu0 %v255
    %356 = vmatprep.subr.bf16.mxu0 0
    %357 = vmatpush1.bf16.msra.mxu0 %v258
    %358 = vmatprep.subr.bf16.mxu0 0
    %359 = vmatpush1.bf16.msra.mxu0 %v261
    %360 = vmatprep.subr.bf16.mxu0 0
    %361 = vmatpush1.bf16.msra.mxu0 %v264
    %362 = vmatprep.subr.bf16.mxu0 0
    %363 = vmatpush1.bf16.msra.mxu0 %v267
    %364 = vmatprep.subr.bf16.mxu0 0
    %365 = vmatpush1.bf16.msra.mxu0 %v270
    %366 = vmatprep.subr.bf16.mxu0 0
    %367 = vmatpush1.bf16.msra.mxu0 %v273
    %368 = vmatprep.subr.bf16.mxu0 0
    %369 = vmatpush1.bf16.msra.mxu0 %v276
    %370 = vmatprep.subr.bf16.mxu0 0
    %371 = vmatpush1.bf16.msra.mxu0 0
    %372 = vmatprep.subr.bf16.mxu0 0
    %373 = vmatpush1.bf16.msra.mxu0 0
    %374 = vmatprep.subr.bf16.mxu0 0
    %375 = vmatpush1.bf16.msra.mxu0 0
    %376 = vmatprep.subr.bf16.mxu0 0
    %377 = vmatpush1.bf16.msra.mxu0 0
    %378 = vmatprep.subr.bf16.mxu0 0
    %379 = vmatpush1.bf16.msra.mxu0 0
    %380 = vmatprep.subr.bf16.mxu0 0
    %381 = vmatpush1.bf16.msra.mxu0 0
    %382 = vmatprep.subr.bf16.mxu0 0
    %383 = vmatpush1.bf16.msra.mxu0 0
    %384 = vmatprep.subr.bf16.mxu0 0
    %385 = vmatpush1.bf16.msra.mxu0 0
    %386 = vmatprep.mubr.bf16.mxu0 0
    %387 = vmatmul.mubr.bf16.gmra.mrb[0].mxu0 %v139
    %v388 = vpop.f32.mrb[0].mxu0
    %v389 = vadd.f32 0.0, %v388
    %v390 = vpop.f32.mrb[0].mxu0
    %v391 = vpop.f32.mrb[0].mxu0
    %v392 = vadd.f32 0.0, %v391
    %v393 = vpop.f32.mrb[0].mxu0
    %394 = vmatprep.mubr.bf16.mxu0 0
    %395 = vmatmul.mubr.bf16.gmra.mrb[0].mxu0 %v140
    %v396 = vpop.f32.mrb[0].mxu0
    %v397 = vadd.f32 0.0, %v396
    %v398 = vpop.f32.mrb[0].mxu0
    %v399 = vpop.f32.mrb[0].mxu0
    %v400 = vadd.f32 0.0, %v399
    %v401 = vpop.f32.mrb[0].mxu0
    %402 = vdwg.mxu0
    %v404 = vcombine.high %v138, %v138
    %v406 = vunpack.c.l.s4 1966171168
    %v407 = vunpack.c.0.s8 %v406
    %v408 = vlaneseq
    %v409 = vshrl.u32 %v408, 7
    %v410 = vsub.s32 %v407, %v409
    %v411 = vrot.slane %v138, %v410
    %v413 = vunpack.c.l.s4 1966171168
    %v414 = vunpack.c.0.s8 %v413
    %v415 = vlaneseq
    %v416 = vshrl.u32 %v415, 7
    %v417 = vsub.s32 %v414, %v416
    %v418 = vrot.slane %v404, %v417
    %v419 = vcombine.high %v411, %v411
    %v420 = vcombine.high %v418, %v418
    %v422 = vunpack.c.l.s4 1966171168
    %v423 = vunpack.c.0.s8 %v422
    %v424 = vlaneseq
    %v425 = vshrl.u32 %v424, 7
    %v426 = vsub.s32 %v423, %v425
    %v427 = vrot.slane %v411, %v426
    %v429 = vunpack.c.l.s4 1966171168
    %v430 = vunpack.c.0.s8 %v429
    %v431 = vlaneseq
    %v432 = vshrl.u32 %v431, 7
    %v433 = vsub.s32 %v430, %v432
    %v434 = vrot.slane %v418, %v433
    %v436 = vunpack.c.l.s4 1966171168
    %v437 = vunpack.c.0.s8 %v436
    %v438 = vlaneseq
    %v439 = vshrl.u32 %v438, 7
    %v440 = vsub.s32 %v437, %v439
    %v441 = vrot.slane %v419, %v440
    %v443 = vunpack.c.l.s4 1966171168
    %v444 = vunpack.c.0.s8 %v443
    %v445 = vlaneseq
    %v446 = vshrl.u32 %v445, 7
    %v447 = vsub.s32 %v444, %v446
    %v448 = vrot.slane %v420, %v447
    %v449 = vcombine.high %v427, %v427
    %v450 = vcombine.high %v434, %v434
    %v451 = vcombine.high %v441, %v441
    %v452 = vcombine.high %v448, %v448
    %v453 = vlaneseq
    %v454 = vshrl.u32 %v453, 7
    %v455 = vsub.s32 0, %v454
    %v456 = vrot.slane %v427, %v455
    %v457 = vlaneseq
    %v458 = vshrl.u32 %v457, 7
    %v459 = vsub.s32 0, %v458
    %v460 = vrot.slane %v441, %v459
    %v461 = vlaneseq
    %v462 = vshrl.u32 %v461, 7
    %v463 = vsub.s32 0, %v462
    %v464 = vrot.slane %v449, %v463
    %v465 = vlaneseq
    %v466 = vshrl.u32 %v465, 7
    %v467 = vsub.s32 0, %v466
    %v468 = vrot.slane %v451, %v467
    %v469 = vlaneseq
    %v470 = vshrl.u32 %v469, 7
    %v471 = vsub.s32 0, %v470
    %v472 = vrot.slane %v434, %v471
    %v473 = vlaneseq
    %v474 = vshrl.u32 %v473, 7
    %v475 = vsub.s32 0, %v474
    %v476 = vrot.slane %v448, %v475
    %v477 = vlaneseq
    %v478 = vshrl.u32 %v477, 7
    %v479 = vsub.s32 0, %v478
    %v480 = vrot.slane %v450, %v479
    %v481 = vlaneseq
    %v482 = vshrl.u32 %v481, 7
    %v483 = vsub.s32 0, %v482
    %v484 = vrot.slane %v452, %v483
    %v493 = vmul.f32 %v336, %v456
    %v494 = vmul.f32 %v340, %v456
    %v495 = vmul.f32 %v346, %v456
    %v496 = vmul.f32 %v350, %v456
    %v497 = vmul.f32 %v336, %v460
    %v498 = vmul.f32 %v340, %v460
    %v499 = vmul.f32 %v346, %v460
    %v500 = vmul.f32 %v350, %v460
    %v501 = vmul.f32 %v336, %v464
    %v502 = vmul.f32 %v340, %v464
    %v503 = vmul.f32 %v346, %v464
    %v504 = vmul.f32 %v350, %v464
    %v505 = vmul.f32 %v336, %v468
    %v506 = vmul.f32 %v340, %v468
    %v507 = vmul.f32 %v346, %v468
    %v508 = vmul.f32 %v350, %v468
    %v509 = vmul.f32 %v336, %v472
    %v510 = vmul.f32 %v340, %v472
    %v511 = vmul.f32 %v346, %v472
    %v512 = vmul.f32 %v350, %v472
    %v513 = vmul.f32 %v336, %v476
    %v514 = vmul.f32 %v340, %v476
    %v515 = vmul.f32 %v346, %v476
    %v516 = vmul.f32 %v350, %v476
    %v517 = vmul.f32 %v336, %v480
    %v518 = vmul.f32 %v340, %v480
    %v519 = vmul.f32 %v346, %v480
    %v520 = vmul.f32 %v350, %v480
    %v521 = vmul.f32 %v336, %v484
    %v522 = vmul.f32 %v340, %v484
    %v523 = vmul.f32 %v346, %v484
    %v524 = vmul.f32 %v350, %v484
    %v525 = vpack.c.bf16 %v494, %v493
    %v526 = vpack.c.bf16 %v496, %v495
    %v527 = vpack.c.bf16 %v498, %v497
    %v528 = vpack.c.bf16 %v500, %v499
    %v529 = vpack.c.bf16 %v502, %v501
    %v530 = vpack.c.bf16 %v504, %v503
    %v531 = vpack.c.bf16 %v506, %v505
    %v532 = vpack.c.bf16 %v508, %v507
    %v533 = vpack.c.bf16 %v510, %v509
    %v534 = vpack.c.bf16 %v512, %v511
    %v535 = vpack.c.bf16 %v514, %v513
    %v536 = vpack.c.bf16 %v516, %v515
    %v537 = vpack.c.bf16 %v518, %v517
    %v538 = vpack.c.bf16 %v520, %v519
    %v539 = vpack.c.bf16 %v522, %v521
    %v540 = vpack.c.bf16 %v524, %v523
    %v541 = vpack.c.bf16 %v342, %v338
    %v542 = vpack.c.bf16 %v352, %v348
    %543 = vmatprep.subr.bf16.mxu0 0
    %544 = vmatpush1.bf16.xpose.msra.mxu0 %v541
    %545 = vmatprep.subr.bf16.mxu0 0
    %546 = vmatpush1.bf16.xpose.msra.mxu0 %v542
    %547 = vmatprep.subr.bf16.mxu0 0
    %548 = vmatpush1.bf16.xpose.msra.mxu0 0
    %549 = vmatprep.subr.bf16.mxu0 0
    %550 = vmatpush1.bf16.xpose.msra.mxu0 0
    %551 = vmatprep.subr.bf16.mxu0 0
    %552 = vmatpush1.bf16.xpose.msra.mxu0 0
    %553 = vmatprep.subr.bf16.mxu0 0
    %554 = vmatpush1.bf16.xpose.msra.mxu0 0
    %555 = vmatprep.subr.bf16.mxu0 0
    %556 = vmatpush1.bf16.xpose.msra.mxu0 0
    %557 = vmatprep.subr.bf16.mxu0 0
    %558 = vmatpush1.bf16.xpose.msra.mxu0 0
    %559 = vmatprep.subr.bf16.mxu0 0
    %560 = vmatpush1.bf16.xpose.msra.mxu0 0
    %561 = vmatprep.subr.bf16.mxu0 0
    %562 = vmatpush1.bf16.xpose.msra.mxu0 0
    %563 = vmatprep.subr.bf16.mxu0 0
    %564 = vmatpush1.bf16.xpose.msra.mxu0 0
    %565 = vmatprep.subr.bf16.mxu0 0
    %566 = vmatpush1.bf16.xpose.msra.mxu0 0
    %567 = vmatprep.subr.bf16.mxu0 0
    %568 = vmatpush1.bf16.xpose.msra.mxu0 0
    %569 = vmatprep.subr.bf16.mxu0 0
    %570 = vmatpush1.bf16.xpose.msra.mxu0 0
    %571 = vmatprep.subr.bf16.mxu0 0
    %572 = vmatpush1.bf16.xpose.msra.mxu0 0
    %573 = vmatprep.subr.bf16.mxu0 0
    %574 = vmatpush1.bf16.xpose.msra.mxu0 0
    %575 = vmatprep.mubr.bf16.mxu0 0
    %576 = vmatmul.mubr.bf16.gmra.mrb[0].mxu0 %v525
    %v577 = vpop.f32.mrb[0].mxu0
    %v578 = vadd.f32 0.0, %v577
    %v579 = vpop.f32.mrb[0].mxu0
    %v580 = vpop.f32.mrb[0].mxu0
    %v581 = vadd.f32 0.0, %v580
    %v582 = vpop.f32.mrb[0].mxu0
    %583 = vmatprep.mubr.bf16.mxu0 0
    %584 = vmatmul.mubr.bf16.gmra.mrb[0].mxu0 %v526
    %v585 = vpop.f32.mrb[0].mxu0
    %v586 = vadd.f32 0.0, %v585
    %v587 = vpop.f32.mrb[0].mxu0
    %v588 = vpop.f32.mrb[0].mxu0
    %v589 = vadd.f32 0.0, %v588
    %v590 = vpop.f32.mrb[0].mxu0
    %591 = vmatprep.mubr.bf16.mxu0 0
    %592 = vmatmul.mubr.bf16.gmra.mrb[0].mxu0 %v527
    %v593 = vpop.f32.mrb[0].mxu0
    %v594 = vadd.f32 0.0, %v593
    %v595 = vpop.f32.mrb[0].mxu0
    %v596 = vpop.f32.mrb[0].mxu0
    %v597 = vadd.f32 0.0, %v596
    %v598 = vpop.f32.mrb[0].mxu0
    %599 = vmatprep.mubr.bf16.mxu0 0
    %600 = vmatmul.mubr.bf16.gmra.mrb[0].mxu0 %v528
    %v601 = vpop.f32.mrb[0].mxu0
    %v602 = vadd.f32 0.0, %v601
    %v603 = vpop.f32.mrb[0].mxu0
    %v604 = vpop.f32.mrb[0].mxu0
    %v605 = vadd.f32 0.0, %v604
    %v606 = vpop.f32.mrb[0].mxu0
    %607 = vmatprep.mubr.bf16.mxu0 0
    %608 = vmatmul.mubr.bf16.gmra.mrb[0].mxu0 %v529
    %v609 = vpop.f32.mrb[0].mxu0
    %v610 = vadd.f32 0.0, %v609
    %v611 = vpop.f32.mrb[0].mxu0
    %v612 = vpop.f32.mrb[0].mxu0
    %v613 = vadd.f32 0.0, %v612
    %v614 = vpop.f32.mrb[0].mxu0
    %615 = vmatprep.mubr.bf16.mxu0 0
    %616 = vmatmul.mubr.bf16.gmra.mrb[0].mxu0 %v530
    %v617 = vpop.f32.mrb[0].mxu0
    %v618 = vadd.f32 0.0, %v617
    %v619 = vpop.f32.mrb[0].mxu0
    %v620 = vpop.f32.mrb[0].mxu0
    %v621 = vadd.f32 0.0, %v620
    %v622 = vpop.f32.mrb[0].mxu0
    %623 = vmatprep.mubr.bf16.mxu0 0
    %624 = vmatmul.mubr.bf16.gmra.mrb[0].mxu0 %v531
    %v625 = vpop.f32.mrb[0].mxu0
    %v626 = vadd.f32 0.0, %v625
    %v627 = vpop.f32.mrb[0].mxu0
    %v628 = vpop.f32.mrb[0].mxu0
    %v629 = vadd.f32 0.0, %v628
    %v630 = vpop.f32.mrb[0].mxu0
    %631 = vmatprep.mubr.bf16.mxu0 0
    %632 = vmatmul.mubr.bf16.gmra.mrb[0].mxu0 %v532
    %v633 = vpop.f32.mrb[0].mxu0
    %v634 = vadd.f32 0.0, %v633
    %v635 = vpop.f32.mrb[0].mxu0
    %v636 = vpop.f32.mrb[0].mxu0
    %v637 = vadd.f32 0.0, %v636
    %v638 = vpop.f32.mrb[0].mxu0
    %639 = vmatprep.mubr.bf16.mxu0 0
    %640 = vmatmul.mubr.bf16.gmra.mrb[0].mxu0 %v533
    %v641 = vpop.f32.mrb[0].mxu0
    %v642 = vadd.f32 0.0, %v641
    %v643 = vpop.f32.mrb[0].mxu0
    %v644 = vpop.f32.mrb[0].mxu0
    %v645 = vadd.f32 0.0, %v644
    %v646 = vpop.f32.mrb[0].mxu0
    %647 = vmatprep.mubr.bf16.mxu0 0
    %648 = vmatmul.mubr.bf16.gmra.mrb[0].mxu0 %v534
    %v649 = vpop.f32.mrb[0].mxu0
    %v650 = vadd.f32 0.0, %v649
    %v651 = vpop.f32.mrb[0].mxu0
    %v652 = vpop.f32.mrb[0].mxu0
    %v653 = vadd.f32 0.0, %v652
    %v654 = vpop.f32.mrb[0].mxu0
    %655 = vmatprep.mubr.bf16.mxu0 0
    %656 = vmatmul.mubr.bf16.gmra.mrb[0].mxu0 %v535
    %v657 = vpop.f32.mrb[0].mxu0
    %v658 = vadd.f32 0.0, %v657
    %v659 = vpop.f32.mrb[0].mxu0
    %v660 = vpop.f32.mrb[0].mxu0
    %v661 = vadd.f32 0.0, %v660
    %v662 = vpop.f32.mrb[0].mxu0
    %663 = vmatprep.mubr.bf16.mxu0 0
    %664 = vmatmul.mubr.bf16.gmra.mrb[0].mxu0 %v536
    %v665 = vpop.f32.mrb[0].mxu0
    %v666 = vadd.f32 0.0, %v665
    %v667 = vpop.f32.mrb[0].mxu0
    %v668 = vpop.f32.mrb[0].mxu0
    %v669 = vadd.f32 0.0, %v668
    %v670 = vpop.f32.mrb[0].mxu0
    %671 = vmatprep.mubr.bf16.mxu0 0
    %672 = vmatmul.mubr.bf16.gmra.mrb[0].mxu0 %v537
    %v673 = vpop.f32.mrb[0].mxu0
    %v674 = vadd.f32 0.0, %v673
    %v675 = vpop.f32.mrb[0].mxu0
    %v676 = vpop.f32.mrb[0].mxu0
    %v677 = vadd.f32 0.0, %v676
    %v678 = vpop.f32.mrb[0].mxu0
    %679 = vmatprep.mubr.bf16.mxu0 0
    %680 = vmatmul.mubr.bf16.gmra.mrb[0].mxu0 %v538
    %v681 = vpop.f32.mrb[0].mxu0
    %v682 = vadd.f32 0.0, %v681
    %v683 = vpop.f32.mrb[0].mxu0
    %v684 = vpop.f32.mrb[0].mxu0
    %v685 = vadd.f32 0.0, %v684
    %v686 = vpop.f32.mrb[0].mxu0
    %687 = vmatprep.mubr.bf16.mxu0 0
    %688 = vmatmul.mubr.bf16.gmra.mrb[0].mxu0 %v539
    %v689 = vpop.f32.mrb[0].mxu0
    %v690 = vadd.f32 0.0, %v689
    %v691 = vpop.f32.mrb[0].mxu0
    %v692 = vpop.f32.mrb[0].mxu0
    %v693 = vadd.f32 0.0, %v692
    %v694 = vpop.f32.mrb[0].mxu0
    %695 = vmatprep.mubr.bf16.mxu0 0
    %696 = vmatmul.mubr.bf16.gmra.mrb[0].mxu0 %v540
    %v697 = vpop.f32.mrb[0].mxu0
    %v698 = vadd.f32 0.0, %v697
    %v699 = vpop.f32.mrb[0].mxu0
    %v700 = vpop.f32.mrb[0].mxu0
    %v701 = vadd.f32 0.0, %v700
    %v702 = vpop.f32.mrb[0].mxu0
    %703 = vdwg.mxu0
    %v704 = vadd.f32 %v578, %v134
    %v705 = vadd.f32 %v581, %v135
    %v706 = vadd.f32 %v586, %v136
    %v707 = vadd.f32 %v589, %v137
    %v708 = vadd.f32 %v594, %v134
    %v709 = vadd.f32 %v597, %v135
    %v710 = vadd.f32 %v602, %v136
    %v711 = vadd.f32 %v605, %v137
    %v712 = vadd.f32 %v610, %v134
    %v713 = vadd.f32 %v613, %v135
    %v714 = vadd.f32 %v618, %v136
    %v715 = vadd.f32 %v621, %v137
    %v716 = vadd.f32 %v626, %v134
    %v717 = vadd.f32 %v629, %v135
    %v718 = vadd.f32 %v634, %v136
    %v719 = vadd.f32 %v637, %v137
    %v720 = vadd.f32 %v642, %v134
    %v721 = vadd.f32 %v645, %v135
    %v722 = vadd.f32 %v650, %v136
    %v723 = vadd.f32 %v653, %v137
    %v724 = vadd.f32 %v658, %v134
    %v725 = vadd.f32 %v661, %v135
    %v726 = vadd.f32 %v666, %v136
    %v727 = vadd.f32 %v669, %v137
    %v728 = vadd.f32 %v674, %v134
    %v729 = vadd.f32 %v677, %v135
    %v730 = vadd.f32 %v682, %v136
    %v731 = vadd.f32 %v685, %v137
    %v732 = vadd.f32 %v690, %v134
    %v733 = vadd.f32 %v693, %v135
    %v734 = vadd.f32 %v698, %v136
    %v735 = vadd.f32 %v701, %v137
    %vm736 = vcmask 261120
    %v737 = vsel %vm736, %v704, -inf
    %738 = vmax.xlane.f32.xlu0 %v737
    %v739 = vpop.xlane.xlu0 %738
    %v740 = vsel %vm736, %v705, -inf
    %741 = vmax.xlane.f32.xlu0 %v740
    %v742 = vpop.xlane.xlu0 %741
    %v743 = vsel %vm736, %v706, -inf
    %744 = vmax.xlane.f32.xlu0 %v743
    %v745 = vpop.xlane.xlu0 %744
    %v746 = vsel %vm736, %v707, -inf
    %747 = vmax.xlane.f32.xlu0 %v746
    %v748 = vpop.xlane.xlu0 %747
    %v749 = vsel %vm736, %v708, -inf
    %750 = vmax.xlane.f32.xlu0 %v749
    %v751 = vpop.xlane.xlu0 %750
    %v752 = vsel %vm736, %v709, -inf
    %753 = vmax.xlane.f32.xlu0 %v752
    %v754 = vpop.xlane.xlu0 %753
    %v755 = vsel %vm736, %v710, -inf
    %756 = vmax.xlane.f32.xlu0 %v755
    %v757 = vpop.xlane.xlu0 %756
    %v758 = vsel %vm736, %v711, -inf
    %759 = vmax.xlane.f32.xlu0 %v758
    %v760 = vpop.xlane.xlu0 %759
    %v761 = vsel %vm736, %v712, -inf
    %762 = vmax.xlane.f32.xlu0 %v761
    %v763 = vpop.xlane.xlu0 %762
    %v764 = vsel %vm736, %v713, -inf
    %765 = vmax.xlane.f32.xlu0 %v764
    %v766 = vpop.xlane.xlu0 %765
    %v767 = vsel %vm736, %v714, -inf
    %768 = vmax.xlane.f32.xlu0 %v767
    %v769 = vpop.xlane.xlu0 %768
    %v770 = vsel %vm736, %v715, -inf
    %771 = vmax.xlane.f32.xlu0 %v770
    %v772 = vpop.xlane.xlu0 %771
    %v773 = vsel %vm736, %v716, -inf
    %774 = vmax.xlane.f32.xlu0 %v773
    %v775 = vpop.xlane.xlu0 %774
    %v776 = vsel %vm736, %v717, -inf
    %777 = vmax.xlane.f32.xlu0 %v776
    %v778 = vpop.xlane.xlu0 %777
    %v779 = vsel %vm736, %v718, -inf
    %780 = vmax.xlane.f32.xlu0 %v779
    %v781 = vpop.xlane.xlu0 %780
    %v782 = vsel %vm736, %v719, -inf
    %783 = vmax.xlane.f32.xlu0 %v782
    %v784 = vpop.xlane.xlu0 %783
    %v785 = vsel %vm736, %v720, -inf
    %786 = vmax.xlane.f32.xlu0 %v785
    %v787 = vpop.xlane.xlu0 %786
    %v788 = vsel %vm736, %v721, -inf
    %789 = vmax.xlane.f32.xlu0 %v788
    %v790 = vpop.xlane.xlu0 %789
    %v791 = vsel %vm736, %v722, -inf
    %792 = vmax.xlane.f32.xlu0 %v791
    %v793 = vpop.xlane.xlu0 %792
    %v794 = vsel %vm736, %v723, -inf
    %795 = vmax.xlane.f32.xlu0 %v794
    %v796 = vpop.xlane.xlu0 %795
    %v797 = vsel %vm736, %v724, -inf
    %798 = vmax.xlane.f32.xlu0 %v797
    %v799 = vpop.xlane.xlu0 %798
    %v800 = vsel %vm736, %v725, -inf
    %801 = vmax.xlane.f32.xlu0 %v800
    %v802 = vpop.xlane.xlu0 %801
    %v803 = vsel %vm736, %v726, -inf
    %804 = vmax.xlane.f32.xlu0 %v803
    %v805 = vpop.xlane.xlu0 %804
    %v806 = vsel %vm736, %v727, -inf
    %807 = vmax.xlane.f32.xlu0 %v806
    %v808 = vpop.xlane.xlu0 %807
    %v809 = vsel %vm736, %v728, -inf
    %810 = vmax.xlane.f32.xlu0 %v809
    %v811 = vpop.xlane.xlu0 %810
    %v812 = vsel %vm736, %v729, -inf
    %813 = vmax.xlane.f32.xlu0 %v812
    %v814 = vpop.xlane.xlu0 %813
    %v815 = vsel %vm736, %v730, -inf
    %816 = vmax.xlane.f32.xlu0 %v815
    %v817 = vpop.xlane.xlu0 %816
    %v818 = vsel %vm736, %v731, -inf
    %819 = vmax.xlane.f32.xlu0 %v818
    %v820 = vpop.xlane.xlu0 %819
    %v821 = vsel %vm736, %v732, -inf
    %822 = vmax.xlane.f32.xlu0 %v821
    %v823 = vpop.xlane.xlu0 %822
    %v824 = vsel %vm736, %v733, -inf
    %825 = vmax.xlane.f32.xlu0 %v824
    %v826 = vpop.xlane.xlu0 %825
    %v827 = vsel %vm736, %v734, -inf
    %828 = vmax.xlane.f32.xlu0 %v827
    %v829 = vpop.xlane.xlu0 %828
    %v830 = vsel %vm736, %v735, -inf
    %831 = vmax.xlane.f32.xlu0 %v830
    %v832 = vpop.xlane.xlu0 %831
    %v833 = vsub.f32 %v704, %v739
    %v834 = vsub.f32 %v705, %v742
    %v835 = vsub.f32 %v706, %v745
    %v836 = vsub.f32 %v707, %v748
    %v837 = vsub.f32 %v708, %v751
    %v838 = vsub.f32 %v709, %v754
    %v839 = vsub.f32 %v710, %v757
    %v840 = vsub.f32 %v711, %v760
    %v841 = vsub.f32 %v712, %v763
    %v842 = vsub.f32 %v713, %v766
    %v843 = vsub.f32 %v714, %v769
    %v844 = vsub.f32 %v715, %v772
    %v845 = vsub.f32 %v716, %v775
    %v846 = vsub.f32 %v717, %v778
    %v847 = vsub.f32 %v718, %v781
    %v848 = vsub.f32 %v719, %v784
    %v849 = vsub.f32 %v720, %v787
    %v850 = vsub.f32 %v721, %v790
    %v851 = vsub.f32 %v722, %v793
    %v852 = vsub.f32 %v723, %v796
    %v853 = vsub.f32 %v724, %v799
    %v854 = vsub.f32 %v725, %v802
    %v855 = vsub.f32 %v726, %v805
    %v856 = vsub.f32 %v727, %v808
    %v857 = vsub.f32 %v728, %v811
    %v858 = vsub.f32 %v729, %v814
    %v859 = vsub.f32 %v730, %v817
    %v860 = vsub.f32 %v731, %v820
    %v861 = vsub.f32 %v732, %v823
    %v862 = vsub.f32 %v733, %v826
    %v863 = vsub.f32 %v734, %v829
    %v864 = vsub.f32 %v735, %v832
    %v865 = vmul.f32 %v833, 1.442695
    %v866 = vpow.pop %v865
    %v867 = vmul.f32 %v834, 1.442695
    %v868 = vpow.pop %v867
    %v869 = vmul.f32 %v835, 1.442695
    %v870 = vpow.pop %v869
    %v871 = vmul.f32 %v836, 1.442695
    %v872 = vpow.pop %v871
    %v873 = vmul.f32 %v837, 1.442695
    %v874 = vpow.pop %v873
    %v875 = vmul.f32 %v838, 1.442695
    %v876 = vpow.pop %v875
    %v877 = vmul.f32 %v839, 1.442695
    %v878 = vpow.pop %v877
    %v879 = vmul.f32 %v840, 1.442695
    %v880 = vpow.pop %v879
    %v881 = vmul.f32 %v841, 1.442695
    %v882 = vpow.pop %v881
    %v883 = vmul.f32 %v842, 1.442695
    %v884 = vpow.pop %v883
    %v885 = vmul.f32 %v843, 1.442695
    %v886 = vpow.pop %v885
    %v887 = vmul.f32 %v844, 1.442695
    %v888 = vpow.pop %v887
    %v889 = vmul.f32 %v845, 1.442695
    %v890 = vpow.pop %v889
    %v891 = vmul.f32 %v846, 1.442695
    %v892 = vpow.pop %v891
    %v893 = vmul.f32 %v847, 1.442695
    %v894 = vpow.pop %v893
    %v895 = vmul.f32 %v848, 1.442695
    %v896 = vpow.pop %v895
    %v897 = vmul.f32 %v849, 1.442695
    %v898 = vpow.pop %v897
    %v899 = vmul.f32 %v850, 1.442695
    %v900 = vpow.pop %v899
    %v901 = vmul.f32 %v851, 1.442695
    %v902 = vpow.pop %v901
    %v903 = vmul.f32 %v852, 1.442695
    %v904 = vpow.pop %v903
    %v905 = vmul.f32 %v853, 1.442695
    %v906 = vpow.pop %v905
    %v907 = vmul.f32 %v854, 1.442695
    %v908 = vpow.pop %v907
    %v909 = vmul.f32 %v855, 1.442695
    %v910 = vpow.pop %v909
    %v911 = vmul.f32 %v856, 1.442695
    %v912 = vpow.pop %v911
    %v913 = vmul.f32 %v857, 1.442695
    %v914 = vpow.pop %v913
    %v915 = vmul.f32 %v858, 1.442695
    %v916 = vpow.pop %v915
    %v917 = vmul.f32 %v859, 1.442695
    %v918 = vpow.pop %v917
    %v919 = vmul.f32 %v860, 1.442695
    %v920 = vpow.pop %v919
    %v921 = vmul.f32 %v861, 1.442695
    %v922 = vpow.pop %v921
    %v923 = vmul.f32 %v862, 1.442695
    %v924 = vpow.pop %v923
    %v925 = vmul.f32 %v863, 1.442695
    %v926 = vpow.pop %v925
    %v927 = vmul.f32 %v864, 1.442695
    %v928 = vpow.pop %v927
    %v929 = vsel %vm736, %v866, 0.0
    %930 = vadd.xlane.f32.xlu0 %v929
    %v931 = vpop.xlane.xlu0 %930
    %v932 = vsel %vm736, %v868, 0.0
    %933 = vadd.xlane.f32.xlu0 %v932
    %v934 = vpop.xlane.xlu0 %933
    %v935 = vsel %vm736, %v870, 0.0
    %936 = vadd.xlane.f32.xlu0 %v935
    %v937 = vpop.xlane.xlu0 %936
    %v938 = vsel %vm736, %v872, 0.0
    %939 = vadd.xlane.f32.xlu0 %v938
    %v940 = vpop.xlane.xlu0 %939
    %v941 = vsel %vm736, %v874, 0.0
    %942 = vadd.xlane.f32.xlu0 %v941
    %v943 = vpop.xlane.xlu0 %942
    %v944 = vsel %vm736, %v876, 0.0
    %945 = vadd.xlane.f32.xlu0 %v944
    %v946 = vpop.xlane.xlu0 %945
    %v947 = vsel %vm736, %v878, 0.0
    %948 = vadd.xlane.f32.xlu0 %v947
    %v949 = vpop.xlane.xlu0 %948
    %v950 = vsel %vm736, %v880, 0.0
    %951 = vadd.xlane.f32.xlu0 %v950
    %v952 = vpop.xlane.xlu0 %951
    %v953 = vsel %vm736, %v882, 0.0
    %954 = vadd.xlane.f32.xlu0 %v953
    %v955 = vpop.xlane.xlu0 %954
    %v956 = vsel %vm736, %v884, 0.0
    %957 = vadd.xlane.f32.xlu0 %v956
    %v958 = vpop.xlane.xlu0 %957
    %v959 = vsel %vm736, %v886, 0.0
    %960 = vadd.xlane.f32.xlu0 %v959
    %v961 = vpop.xlane.xlu0 %960
    %v962 = vsel %vm736, %v888, 0.0
    %963 = vadd.xlane.f32.xlu0 %v962
    %v964 = vpop.xlane.xlu0 %963
    %v965 = vsel %vm736, %v890, 0.0
    %966 = vadd.xlane.f32.xlu0 %v965
    %v967 = vpop.xlane.xlu0 %966
    %v968 = vsel %vm736, %v892, 0.0
    %969 = vadd.xlane.f32.xlu0 %v968
    %v970 = vpop.xlane.xlu0 %969
    %v971 = vsel %vm736, %v894, 0.0
    %972 = vadd.xlane.f32.xlu0 %v971
    %v973 = vpop.xlane.xlu0 %972
    %v974 = vsel %vm736, %v896, 0.0
    %975 = vadd.xlane.f32.xlu0 %v974
    %v976 = vpop.xlane.xlu0 %975
    %v977 = vsel %vm736, %v898, 0.0
    %978 = vadd.xlane.f32.xlu0 %v977
    %v979 = vpop.xlane.xlu0 %978
    %v980 = vsel %vm736, %v900, 0.0
    %981 = vadd.xlane.f32.xlu0 %v980
    %v982 = vpop.xlane.xlu0 %981
    %v983 = vsel %vm736, %v902, 0.0
    %984 = vadd.xlane.f32.xlu0 %v983
    %v985 = vpop.xlane.xlu0 %984
    %v986 = vsel %vm736, %v904, 0.0
    %987 = vadd.xlane.f32.xlu0 %v986
    %v988 = vpop.xlane.xlu0 %987
    %v989 = vsel %vm736, %v906, 0.0
    %990 = vadd.xlane.f32.xlu0 %v989
    %v991 = vpop.xlane.xlu0 %990
    %v992 = vsel %vm736, %v908, 0.0
    %993 = vadd.xlane.f32.xlu0 %v992
    %v994 = vpop.xlane.xlu0 %993
    %v995 = vsel %vm736, %v910, 0.0
    %996 = vadd.xlane.f32.xlu0 %v995
    %v997 = vpop.xlane.xlu0 %996
    %v998 = vsel %vm736, %v912, 0.0
    %999 = vadd.xlane.f32.xlu0 %v998
    %v1000 = vpop.xlane.xlu0 %999
    %v1001 = vsel %vm736, %v914, 0.0
    %1002 = vadd.xlane.f32.xlu0 %v1001
    %v1003 = vpop.xlane.xlu0 %1002
    %v1004 = vsel %vm736, %v916, 0.0
    %1005 = vadd.xlane.f32.xlu0 %v1004
    %v1006 = vpop.xlane.xlu0 %1005
    %v1007 = vsel %vm736, %v918, 0.0
    %1008 = vadd.xlane.f32.xlu0 %v1007
    %v1009 = vpop.xlane.xlu0 %1008
    %v1010 = vsel %vm736, %v920, 0.0
    %1011 = vadd.xlane.f32.xlu0 %v1010
    %v1012 = vpop.xlane.xlu0 %1011
    %v1013 = vsel %vm736, %v922, 0.0
    %1014 = vadd.xlane.f32.xlu0 %v1013
    %v1015 = vpop.xlane.xlu0 %1014
    %v1016 = vsel %vm736, %v924, 0.0
    %1017 = vadd.xlane.f32.xlu0 %v1016
    %v1018 = vpop.xlane.xlu0 %1017
    %v1019 = vsel %vm736, %v926, 0.0
    %1020 = vadd.xlane.f32.xlu0 %v1019
    %v1021 = vpop.xlane.xlu0 %1020
    %v1022 = vsel %vm736, %v928, 0.0
    %1023 = vadd.xlane.f32.xlu0 %v1022
    %v1024 = vpop.xlane.xlu0 %1023
    %v1025 = vrcp.pop %v931
    %v1026 = vrcp.pop %v934
    %v1027 = vrcp.pop %v937
    %v1028 = vrcp.pop %v940
    %v1029 = vrcp.pop %v943
    %v1030 = vrcp.pop %v946
    %v1031 = vrcp.pop %v949
    %v1032 = vrcp.pop %v952
    %v1033 = vrcp.pop %v955
    %v1034 = vrcp.pop %v958
    %v1035 = vrcp.pop %v961
    %v1036 = vrcp.pop %v964
    %v1037 = vrcp.pop %v967
    %v1038 = vrcp.pop %v970
    %v1039 = vrcp.pop %v973
    %v1040 = vrcp.pop %v976
    %v1041 = vrcp.pop %v979
    %v1042 = vrcp.pop %v982
    %v1043 = vrcp.pop %v985
    %v1044 = vrcp.pop %v988
    %v1045 = vrcp.pop %v991
    %v1046 = vrcp.pop %v994
    %v1047 = vrcp.pop %v997
    %v1048 = vrcp.pop %v1000
    %v1049 = vrcp.pop %v1003
    %v1050 = vrcp.pop %v1006
    %v1051 = vrcp.pop %v1009
    %v1052 = vrcp.pop %v1012
    %v1053 = vrcp.pop %v1015
    %v1054 = vrcp.pop %v1018
    %v1055 = vrcp.pop %v1021
    %v1056 = vrcp.pop %v1024
    %v1057 = vmul.f32 %v866, %v1025
    %v1058 = vmul.f32 %v868, %v1026
    %v1059 = vmul.f32 %v870, %v1027
    %v1060 = vmul.f32 %v872, %v1028
    %v1061 = vmul.f32 %v874, %v1029
    %v1062 = vmul.f32 %v876, %v1030
    %v1063 = vmul.f32 %v878, %v1031
    %v1064 = vmul.f32 %v880, %v1032
    %v1065 = vmul.f32 %v882, %v1033
    %v1066 = vmul.f32 %v884, %v1034
    %v1067 = vmul.f32 %v886, %v1035
    %v1068 = vmul.f32 %v888, %v1036
    %v1069 = vmul.f32 %v890, %v1037
    %v1070 = vmul.f32 %v892, %v1038
    %v1071 = vmul.f32 %v894, %v1039
    %v1072 = vmul.f32 %v896, %v1040
    %v1073 = vmul.f32 %v898, %v1041
    %v1074 = vmul.f32 %v900, %v1042
    %v1075 = vmul.f32 %v902, %v1043
    %v1076 = vmul.f32 %v904, %v1044
    %v1077 = vmul.f32 %v906, %v1045
    %v1078 = vmul.f32 %v908, %v1046
    %v1079 = vmul.f32 %v910, %v1047
    %v1080 = vmul.f32 %v912, %v1048
    %v1081 = vmul.f32 %v914, %v1049
    %v1082 = vmul.f32 %v916, %v1050
    %v1083 = vmul.f32 %v918, %v1051
    %v1084 = vmul.f32 %v920, %v1052
    %v1085 = vmul.f32 %v922, %v1053
    %v1086 = vmul.f32 %v924, %v1054
    %v1087 = vmul.f32 %v926, %v1055
    %v1088 = vmul.f32 %v928, %v1056
    %v1089 = vpack.c.bf16 %v1058, %v1057
    %v1090 = vpack.c.bf16 %v1060, %v1059
    %v1091 = vpack.c.bf16 %v1062, %v1061
    %v1092 = vpack.c.bf16 %v1064, %v1063
    %v1093 = vpack.c.bf16 %v1066, %v1065
    %v1094 = vpack.c.bf16 %v1068, %v1067
    %v1095 = vpack.c.bf16 %v1070, %v1069
    %v1096 = vpack.c.bf16 %v1072, %v1071
    %v1097 = vpack.c.bf16 %v1074, %v1073
    %v1098 = vpack.c.bf16 %v1076, %v1075
    %v1099 = vpack.c.bf16 %v1078, %v1077
    %v1100 = vpack.c.bf16 %v1080, %v1079
    %v1101 = vpack.c.bf16 %v1082, %v1081
    %v1102 = vpack.c.bf16 %v1084, %v1083
    %v1103 = vpack.c.bf16 %v1086, %v1085
    %v1104 = vpack.c.bf16 %v1088, %v1087
    %v1105 = vmul.f32 %v389, %v456
    %v1106 = vmul.f32 %v392, %v456
    %v1107 = vmul.f32 %v397, %v456
    %v1108 = vmul.f32 %v400, %v456
    %v1109 = vmul.f32 %v389, %v460
    %v1110 = vmul.f32 %v392, %v460
    %v1111 = vmul.f32 %v397, %v460
    %v1112 = vmul.f32 %v400, %v460
    %v1113 = vmul.f32 %v389, %v464
    %v1114 = vmul.f32 %v392, %v464
    %v1115 = vmul.f32 %v397, %v464
    %v1116 = vmul.f32 %v400, %v464
    %v1117 = vmul.f32 %v389, %v468
    %v1118 = vmul.f32 %v392, %v468
    %v1119 = vmul.f32 %v397, %v468
    %v1120 = vmul.f32 %v400, %v468
    %v1121 = vmul.f32 %v389, %v472
    %v1122 = vmul.f32 %v392, %v472
    %v1123 = vmul.f32 %v397, %v472
    %v1124 = vmul.f32 %v400, %v472
    %v1125 = vmul.f32 %v389, %v476
    %v1126 = vmul.f32 %v392, %v476
    %v1127 = vmul.f32 %v397, %v476
    %v1128 = vmul.f32 %v400, %v476
    %v1129 = vmul.f32 %v389, %v480
    %v1130 = vmul.f32 %v392, %v480
    %v1131 = vmul.f32 %v397, %v480
    %v1132 = vmul.f32 %v400, %v480
    %v1133 = vmul.f32 %v389, %v484
    %v1134 = vmul.f32 %v392, %v484
    %v1135 = vmul.f32 %v397, %v484
    %v1136 = vmul.f32 %v400, %v484
    %v1137 = vpack.c.bf16 %v1106, %v1105
    %v1138 = vpack.c.bf16 %v1108, %v1107
    %v1139 = vpack.c.bf16 %v1110, %v1109
    %v1140 = vpack.c.bf16 %v1112, %v1111
    %v1141 = vpack.c.bf16 %v1114, %v1113
    %v1142 = vpack.c.bf16 %v1116, %v1115
    %v1143 = vpack.c.bf16 %v1118, %v1117
    %v1144 = vpack.c.bf16 %v1120, %v1119
    %v1145 = vpack.c.bf16 %v1122, %v1121
    %v1146 = vpack.c.bf16 %v1124, %v1123
    %v1147 = vpack.c.bf16 %v1126, %v1125
    %v1148 = vpack.c.bf16 %v1128, %v1127
    %v1149 = vpack.c.bf16 %v1130, %v1129
    %v1150 = vpack.c.bf16 %v1132, %v1131
    %v1151 = vpack.c.bf16 %v1134, %v1133
    %v1152 = vpack.c.bf16 %v1136, %v1135
    %v1154 = vsel %vm736, %v1091, 0
    %v1157 = vsel %vm736, %v1092, 0
    %1159 = vmatprep.subr.bf16.mxu0 0
    %1160 = vmatpush1.bf16.msra.mxu0 %v1139
    %1161 = vmatprep.subr.bf16.mxu0 0
    %1162 = vmatpush1.bf16.msra.mxu0 %v1140
    %1163 = vmatprep.subr.bf16.mxu0 0
    %1164 = vmatpush1.bf16.msra.mxu0 0
    %1165 = vmatprep.subr.bf16.mxu0 0
    %1166 = vmatpush1.bf16.msra.mxu0 0
    %1167 = vmatprep.subr.bf16.mxu0 0
    %1168 = vmatpush1.bf16.msra.mxu0 0
    %1169 = vmatprep.subr.bf16.mxu0 0
    %1170 = vmatpush1.bf16.msra.mxu0 0
    %1171 = vmatprep.subr.bf16.mxu0 0
    %1172 = vmatpush1.bf16.msra.mxu0 0
    %1173 = vmatprep.subr.bf16.mxu0 0
    %1174 = vmatpush1.bf16.msra.mxu0 0
    %1175 = vmatprep.subr.bf16.mxu0 0
    %1176 = vmatpush1.bf16.msra.mxu0 0
    %1177 = vmatprep.subr.bf16.mxu0 0
    %1178 = vmatpush1.bf16.msra.mxu0 0
    %1179 = vmatprep.subr.bf16.mxu0 0
    %1180 = vmatpush1.bf16.msra.mxu0 0
    %1181 = vmatprep.subr.bf16.mxu0 0
    %1182 = vmatpush1.bf16.msra.mxu0 0
    %1183 = vmatprep.subr.bf16.mxu0 0
    %1184 = vmatpush1.bf16.msra.mxu0 0
    %1185 = vmatprep.subr.bf16.mxu0 0
    %1186 = vmatpush1.bf16.msra.mxu0 0
    %1187 = vmatprep.subr.bf16.mxu0 0
    %1188 = vmatpush1.bf16.msra.mxu0 0
    %1189 = vmatprep.subr.bf16.mxu0 0
    %1190 = vmatpush1.bf16.msra.mxu0 0
    %1191 = vmatprep.mubr.bf16.mxu0 0
    %1192 = vmatmul.mubr.bf16.gmra.mrb[0].mxu0 %v1154
    %v1193 = vpop.f32.mrb[0].mxu0
    %v1194 = vadd.f32 0.0, %v1193
    %v1195 = vpop.f32.mrb[0].mxu0
    %v1196 = vpop.f32.mrb[0].mxu0
    %v1197 = vadd.f32 0.0, %v1196
    %v1198 = vpop.f32.mrb[0].mxu0
    %1199 = vmatprep.mubr.bf16.mxu0 0
    %1200 = vmatmul.mubr.bf16.gmra.mrb[0].mxu0 %v1157
    %v1201 = vpop.f32.mrb[0].mxu0
    %v1202 = vadd.f32 0.0, %v1201
    %v1203 = vpop.f32.mrb[0].mxu0
    %v1204 = vpop.f32.mrb[0].mxu0
    %v1205 = vadd.f32 0.0, %v1204
    %v1206 = vpop.f32.mrb[0].mxu0
    %1207 = vdwg.mxu0
    %v1209 = vsel %vm736, %v1089, 0
    %v1212 = vsel %vm736, %v1090, 0
    %1214 = vmatprep.subr.bf16.mxu0 0
    %1215 = vmatpush1.bf16.msra.mxu0 %v1137
    %1216 = vmatprep.subr.bf16.mxu0 0
    %1217 = vmatpush1.bf16.msra.mxu0 %v1138
    %1218 = vmatprep.subr.bf16.mxu0 0
    %1219 = vmatpush1.bf16.msra.mxu0 0
    %1220 = vmatprep.subr.bf16.mxu0 0
    %1221 = vmatpush1.bf16.msra.mxu0 0
    %1222 = vmatprep.subr.bf16.mxu0 0
    %1223 = vmatpush1.bf16.msra.mxu0 0
    %1224 = vmatprep.subr.bf16.mxu0 0
    %1225 = vmatpush1.bf16.msra.mxu0 0
    %1226 = vmatprep.subr.bf16.mxu0 0
    %1227 = vmatpush1.bf16.msra.mxu0 0
    %1228 = vmatprep.subr.bf16.mxu0 0
    %1229 = vmatpush1.bf16.msra.mxu0 0
    %1230 = vmatprep.subr.bf16.mxu0 0
    %1231 = vmatpush1.bf16.msra.mxu0 0
    %1232 = vmatprep.subr.bf16.mxu0 0
    %1233 = vmatpush1.bf16.msra.mxu0 0
    %1234 = vmatprep.subr.bf16.mxu0 0
    %1235 = vmatpush1.bf16.msra.mxu0 0
    %1236 = vmatprep.subr.bf16.mxu0 0
    %1237 = vmatpush1.bf16.msra.mxu0 0
    %1238 = vmatprep.subr.bf16.mxu0 0
    %1239 = vmatpush1.bf16.msra.mxu0 0
    %1240 = vmatprep.subr.bf16.mxu0 0
    %1241 = vmatpush1.bf16.msra.mxu0 0
    %1242 = vmatprep.subr.bf16.mxu0 0
    %1243 = vmatpush1.bf16.msra.mxu0 0
    %1244 = vmatprep.subr.bf16.mxu0 0
    %1245 = vmatpush1.bf16.msra.mxu0 0
    %1246 = vmatprep.mubr.bf16.mxu0 0
    %1247 = vmatmul.mubr.bf16.gmra.mrb[0].mxu0 %v1209
    %v1248 = vpop.f32.mrb[0].mxu0
    %v1249 = vadd.f32 %v1194, %v1248
    %v1250 = vpop.f32.mrb[0].mxu0
    %v1251 = vpop.f32.mrb[0].mxu0
    %v1252 = vadd.f32 %v1197, %v1251
    %v1253 = vpop.f32.mrb[0].mxu0
    %1254 = vmatprep.mubr.bf16.mxu0 0
    %1255 = vmatmul.mubr.bf16.gmra.mrb[0].mxu0 %v1212
    %v1256 = vpop.f32.mrb[0].mxu0
    %v1257 = vadd.f32 %v1202, %v1256
    %v1258 = vpop.f32.mrb[0].mxu0
    %v1259 = vpop.f32.mrb[0].mxu0
    %v1260 = vadd.f32 %v1205, %v1259
    %v1261 = vpop.f32.mrb[0].mxu0
    %1262 = vdwg.mxu0
    %v1264 = vsel %vm736, %v1093, 0
    %v1267 = vsel %vm736, %v1094, 0
    %1269 = vmatprep.subr.bf16.mxu0 0
    %1270 = vmatpush1.bf16.msra.mxu0 %v1141
    %1271 = vmatprep.subr.bf16.mxu0 0
    %1272 = vmatpush1.bf16.msra.mxu0 %v1142
    %1273 = vmatprep.subr.bf16.mxu0 0
    %1274 = vmatpush1.bf16.msra.mxu0 0
    %1275 = vmatprep.subr.bf16.mxu0 0
    %1276 = vmatpush1.bf16.msra.mxu0 0
    %1277 = vmatprep.subr.bf16.mxu0 0
    %1278 = vmatpush1.bf16.msra.mxu0 0
    %1279 = vmatprep.subr.bf16.mxu0 0
    %1280 = vmatpush1.bf16.msra.mxu0 0
    %1281 = vmatprep.subr.bf16.mxu0 0
    %1282 = vmatpush1.bf16.msra.mxu0 0
    %1283 = vmatprep.subr.bf16.mxu0 0
    %1284 = vmatpush1.bf16.msra.mxu0 0
    %1285 = vmatprep.subr.bf16.mxu0 0
    %1286 = vmatpush1.bf16.msra.mxu0 0
    %1287 = vmatprep.subr.bf16.mxu0 0
    %1288 = vmatpush1.bf16.msra.mxu0 0
    %1289 = vmatprep.subr.bf16.mxu0 0
    %1290 = vmatpush1.bf16.msra.mxu0 0
    %1291 = vmatprep.subr.bf16.mxu0 0
    %1292 = vmatpush1.bf16.msra.mxu0 0
    %1293 = vmatprep.subr.bf16.mxu0 0
    %1294 = vmatpush1.bf16.msra.mxu0 0
    %1295 = vmatprep.subr.bf16.mxu0 0
    %1296 = vmatpush1.bf16.msra.mxu0 0
    %1297 = vmatprep.subr.bf16.mxu0 0
    %1298 = vmatpush1.bf16.msra.mxu0 0
    %1299 = vmatprep.subr.bf16.mxu0 0
    %1300 = vmatpush1.bf16.msra.mxu0 0
    %1301 = vmatprep.mubr.bf16.mxu0 0
    %1302 = vmatmul.mubr.bf16.gmra.mrb[0].mxu0 %v1264
    %v1303 = vpop.f32.mrb[0].mxu0
    %v1304 = vadd.f32 0.0, %v1303
    %v1305 = vpop.f32.mrb[0].mxu0
    %v1306 = vpop.f32.mrb[0].mxu0
    %v1307 = vadd.f32 0.0, %v1306
    %v1308 = vpop.f32.mrb[0].mxu0
    %1309 = vmatprep.mubr.bf16.mxu0 0
    %1310 = vmatmul.mubr.bf16.gmra.mrb[0].mxu0 %v1267
    %v1311 = vpop.f32.mrb[0].mxu0
    %v1312 = vadd.f32 0.0, %v1311
    %v1313 = vpop.f32.mrb[0].mxu0
    %v1314 = vpop.f32.mrb[0].mxu0
    %v1315 = vadd.f32 0.0, %v1314
    %v1316 = vpop.f32.mrb[0].mxu0
    %1317 = vdwg.mxu0
    %v1318 = vadd.f32 %v1249, %v1304
    %v1319 = vadd.f32 %v1252, %v1307
    %v1320 = vadd.f32 %v1257, %v1312
    %v1321 = vadd.f32 %v1260, %v1315
    %v1323 = vsel %vm736, %v1095, 0
    %v1326 = vsel %vm736, %v1096, 0
    %1328 = vmatprep.subr.bf16.mxu0 0
    %1329 = vmatpush1.bf16.msra.mxu0 %v1143
    %1330 = vmatprep.subr.bf16.mxu0 0
    %1331 = vmatpush1.bf16.msra.mxu0 %v1144
    %1332 = vmatprep.subr.bf16.mxu0 0
    %1333 = vmatpush1.bf16.msra.mxu0 0
    %1334 = vmatprep.subr.bf16.mxu0 0
    %1335 = vmatpush1.bf16.msra.mxu0 0
    %1336 = vmatprep.subr.bf16.mxu0 0
    %1337 = vmatpush1.bf16.msra.mxu0 0
    %1338 = vmatprep.subr.bf16.mxu0 0
    %1339 = vmatpush1.bf16.msra.mxu0 0
    %1340 = vmatprep.subr.bf16.mxu0 0
    %1341 = vmatpush1.bf16.msra.mxu0 0
    %1342 = vmatprep.subr.bf16.mxu0 0
    %1343 = vmatpush1.bf16.msra.mxu0 0
    %1344 = vmatprep.subr.bf16.mxu0 0
    %1345 = vmatpush1.bf16.msra.mxu0 0
    %1346 = vmatprep.subr.bf16.mxu0 0
    %1347 = vmatpush1.bf16.msra.mxu0 0
    %1348 = vmatprep.subr.bf16.mxu0 0
    %1349 = vmatpush1.bf16.msra.mxu0 0
    %1350 = vmatprep.subr.bf16.mxu0 0
    %1351 = vmatpush1.bf16.msra.mxu0 0
    %1352 = vmatprep.subr.bf16.mxu0 0
    %1353 = vmatpush1.bf16.msra.mxu0 0
    %1354 = vmatprep.subr.bf16.mxu0 0
    %1355 = vmatpush1.bf16.msra.mxu0 0
    %1356 = vmatprep.subr.bf16.mxu0 0
    %1357 = vmatpush1.bf16.msra.mxu0 0
    %1358 = vmatprep.subr.bf16.mxu0 0
    %1359 = vmatpush1.bf16.msra.mxu0 0
    %1360 = vmatprep.mubr.bf16.mxu0 0
    %1361 = vmatmul.mubr.bf16.gmra.mrb[0].mxu0 %v1323
    %v1362 = vpop.f32.mrb[0].mxu0
    %v1363 = vadd.f32 0.0, %v1362
    %v1364 = vpop.f32.mrb[0].mxu0
    %v1365 = vpop.f32.mrb[0].mxu0
    %v1366 = vadd.f32 0.0, %v1365
    %v1367 = vpop.f32.mrb[0].mxu0
    %1368 = vmatprep.mubr.bf16.mxu0 0
    %1369 = vmatmul.mubr.bf16.gmra.mrb[0].mxu0 %v1326
    %v1370 = vpop.f32.mrb[0].mxu0
    %v1371 = vadd.f32 0.0, %v1370
    %v1372 = vpop.f32.mrb[0].mxu0
    %v1373 = vpop.f32.mrb[0].mxu0
    %v1374 = vadd.f32 0.0, %v1373
    %v1375 = vpop.f32.mrb[0].mxu0
    %1376 = vdwg.mxu0
    %v1377 = vadd.f32 %v1318, %v1363
    %v1378 = vadd.f32 %v1319, %v1366
    %v1379 = vadd.f32 %v1320, %v1371
    %v1380 = vadd.f32 %v1321, %v1374
    %v1382 = vsel %vm736, %v1097, 0
    %v1385 = vsel %vm736, %v1098, 0
    %1387 = vmatprep.subr.bf16.mxu0 0
    %1388 = vmatpush1.bf16.msra.mxu0 %v1145
    %1389 = vmatprep.subr.bf16.mxu0 0
    %1390 = vmatpush1.bf16.msra.mxu0 %v1146
    %1391 = vmatprep.subr.bf16.mxu0 0
    %1392 = vmatpush1.bf16.msra.mxu0 0
    %1393 = vmatprep.subr.bf16.mxu0 0
    %1394 = vmatpush1.bf16.msra.mxu0 0
    %1395 = vmatprep.subr.bf16.mxu0 0
    %1396 = vmatpush1.bf16.msra.mxu0 0
    %1397 = vmatprep.subr.bf16.mxu0 0
    %1398 = vmatpush1.bf16.msra.mxu0 0
    %1399 = vmatprep.subr.bf16.mxu0 0
    %1400 = vmatpush1.bf16.msra.mxu0 0
    %1401 = vmatprep.subr.bf16.mxu0 0
    %1402 = vmatpush1.bf16.msra.mxu0 0
    %1403 = vmatprep.subr.bf16.mxu0 0
    %1404 = vmatpush1.bf16.msra.mxu0 0
    %1405 = vmatprep.subr.bf16.mxu0 0
    %1406 = vmatpush1.bf16.msra.mxu0 0
    %1407 = vmatprep.subr.bf16.mxu0 0
    %1408 = vmatpush1.bf16.msra.mxu0 0
    %1409 = vmatprep.subr.bf16.mxu0 0
    %1410 = vmatpush1.bf16.msra.mxu0 0
    %1411 = vmatprep.subr.bf16.mxu0 0
    %1412 = vmatpush1.bf16.msra.mxu0 0
    %1413 = vmatprep.subr.bf16.mxu0 0
    %1414 = vmatpush1.bf16.msra.mxu0 0
    %1415 = vmatprep.subr.bf16.mxu0 0
    %1416 = vmatpush1.bf16.msra.mxu0 0
    %1417 = vmatprep.subr.bf16.mxu0 0
    %1418 = vmatpush1.bf16.msra.mxu0 0
    %1419 = vmatprep.mubr.bf16.mxu0 0
    %1420 = vmatmul.mubr.bf16.gmra.mrb[0].mxu0 %v1382
    %v1421 = vpop.f32.mrb[0].mxu0
    %v1422 = vadd.f32 0.0, %v1421
    %v1423 = vpop.f32.mrb[0].mxu0
    %v1424 = vpop.f32.mrb[0].mxu0
    %v1425 = vadd.f32 0.0, %v1424
    %v1426 = vpop.f32.mrb[0].mxu0
    %1427 = vmatprep.mubr.bf16.mxu0 0
    %1428 = vmatmul.mubr.bf16.gmra.mrb[0].mxu0 %v1385
    %v1429 = vpop.f32.mrb[0].mxu0
    %v1430 = vadd.f32 0.0, %v1429
    %v1431 = vpop.f32.mrb[0].mxu0
    %v1432 = vpop.f32.mrb[0].mxu0
    %v1433 = vadd.f32 0.0, %v1432
    %v1434 = vpop.f32.mrb[0].mxu0
    %1435 = vdwg.mxu0
    %v1436 = vadd.f32 %v1377, %v1422
    %v1437 = vadd.f32 %v1378, %v1425
    %v1438 = vadd.f32 %v1379, %v1430
    %v1439 = vadd.f32 %v1380, %v1433
    %v1441 = vsel %vm736, %v1099, 0
    %v1444 = vsel %vm736, %v1100, 0
    %1446 = vmatprep.subr.bf16.mxu0 0
    %1447 = vmatpush1.bf16.msra.mxu0 %v1147
    %1448 = vmatprep.subr.bf16.mxu0 0
    %1449 = vmatpush1.bf16.msra.mxu0 %v1148
    %1450 = vmatprep.subr.bf16.mxu0 0
    %1451 = vmatpush1.bf16.msra.mxu0 0
    %1452 = vmatprep.subr.bf16.mxu0 0
    %1453 = vmatpush1.bf16.msra.mxu0 0
    %1454 = vmatprep.subr.bf16.mxu0 0
    %1455 = vmatpush1.bf16.msra.mxu0 0
    %1456 = vmatprep.subr.bf16.mxu0 0
    %1457 = vmatpush1.bf16.msra.mxu0 0
    %1458 = vmatprep.subr.bf16.mxu0 0
    %1459 = vmatpush1.bf16.msra.mxu0 0
    %1460 = vmatprep.subr.bf16.mxu0 0
    %1461 = vmatpush1.bf16.msra.mxu0 0
    %1462 = vmatprep.subr.bf16.mxu0 0
    %1463 = vmatpush1.bf16.msra.mxu0 0
    %1464 = vmatprep.subr.bf16.mxu0 0
    %1465 = vmatpush1.bf16.msra.mxu0 0
    %1466 = vmatprep.subr.bf16.mxu0 0
    %1467 = vmatpush1.bf16.msra.mxu0 0
    %1468 = vmatprep.subr.bf16.mxu0 0
    %1469 = vmatpush1.bf16.msra.mxu0 0
    %1470 = vmatprep.subr.bf16.mxu0 0
    %1471 = vmatpush1.bf16.msra.mxu0 0
    %1472 = vmatprep.subr.bf16.mxu0 0
    %1473 = vmatpush1.bf16.msra.mxu0 0
    %1474 = vmatprep.subr.bf16.mxu0 0
    %1475 = vmatpush1.bf16.msra.mxu0 0
    %1476 = vmatprep.subr.bf16.mxu0 0
    %1477 = vmatpush1.bf16.msra.mxu0 0
    %1478 = vmatprep.mubr.bf16.mxu0 0
    %1479 = vmatmul.mubr.bf16.gmra.mrb[0].mxu0 %v1441
    %v1480 = vpop.f32.mrb[0].mxu0
    %v1481 = vadd.f32 0.0, %v1480
    %v1482 = vpop.f32.mrb[0].mxu0
    %v1483 = vpop.f32.mrb[0].mxu0
    %v1484 = vadd.f32 0.0, %v1483
    %v1485 = vpop.f32.mrb[0].mxu0
    %1486 = vmatprep.mubr.bf16.mxu0 0
    %1487 = vmatmul.mubr.bf16.gmra.mrb[0].mxu0 %v1444
    %v1488 = vpop.f32.mrb[0].mxu0
    %v1489 = vadd.f32 0.0, %v1488
    %v1490 = vpop.f32.mrb[0].mxu0
    %v1491 = vpop.f32.mrb[0].mxu0
    %v1492 = vadd.f32 0.0, %v1491
    %v1493 = vpop.f32.mrb[0].mxu0
    %1494 = vdwg.mxu0
    %v1495 = vadd.f32 %v1436, %v1481
    %v1496 = vadd.f32 %v1437, %v1484
    %v1497 = vadd.f32 %v1438, %v1489
    %v1498 = vadd.f32 %v1439, %v1492
    %v1500 = vsel %vm736, %v1101, 0
    %v1503 = vsel %vm736, %v1102, 0
    %1505 = vmatprep.subr.bf16.mxu0 0
    %1506 = vmatpush1.bf16.msra.mxu0 %v1149
    %1507 = vmatprep.subr.bf16.mxu0 0
    %1508 = vmatpush1.bf16.msra.mxu0 %v1150
    %1509 = vmatprep.subr.bf16.mxu0 0
    %1510 = vmatpush1.bf16.msra.mxu0 0
    %1511 = vmatprep.subr.bf16.mxu0 0
    %1512 = vmatpush1.bf16.msra.mxu0 0
    %1513 = vmatprep.subr.bf16.mxu0 0
    %1514 = vmatpush1.bf16.msra.mxu0 0
    %1515 = vmatprep.subr.bf16.mxu0 0
    %1516 = vmatpush1.bf16.msra.mxu0 0
    %1517 = vmatprep.subr.bf16.mxu0 0
    %1518 = vmatpush1.bf16.msra.mxu0 0
    %1519 = vmatprep.subr.bf16.mxu0 0
    %1520 = vmatpush1.bf16.msra.mxu0 0
    %1521 = vmatprep.subr.bf16.mxu0 0
    %1522 = vmatpush1.bf16.msra.mxu0 0
    %1523 = vmatprep.subr.bf16.mxu0 0
    %1524 = vmatpush1.bf16.msra.mxu0 0
    %1525 = vmatprep.subr.bf16.mxu0 0
    %1526 = vmatpush1.bf16.msra.mxu0 0
    %1527 = vmatprep.subr.bf16.mxu0 0
    %1528 = vmatpush1.bf16.msra.mxu0 0
    %1529 = vmatprep.subr.bf16.mxu0 0
    %1530 = vmatpush1.bf16.msra.mxu0 0
    %1531 = vmatprep.subr.bf16.mxu0 0
    %1532 = vmatpush1.bf16.msra.mxu0 0
    %1533 = vmatprep.subr.bf16.mxu0 0
    %1534 = vmatpush1.bf16.msra.mxu0 0
    %1535 = vmatprep.subr.bf16.mxu0 0
    %1536 = vmatpush1.bf16.msra.mxu0 0
    %1537 = vmatprep.mubr.bf16.mxu0 0
    %1538 = vmatmul.mubr.bf16.gmra.mrb[0].mxu0 %v1500
    %v1539 = vpop.f32.mrb[0].mxu0
    %v1540 = vadd.f32 0.0, %v1539
    %v1541 = vpop.f32.mrb[0].mxu0
    %v1542 = vpop.f32.mrb[0].mxu0
    %v1543 = vadd.f32 0.0, %v1542
    %v1544 = vpop.f32.mrb[0].mxu0
    %1545 = vmatprep.mubr.bf16.mxu0 0
    %1546 = vmatmul.mubr.bf16.gmra.mrb[0].mxu0 %v1503
    %v1547 = vpop.f32.mrb[0].mxu0
    %v1548 = vadd.f32 0.0, %v1547
    %v1549 = vpop.f32.mrb[0].mxu0
    %v1550 = vpop.f32.mrb[0].mxu0
    %v1551 = vadd.f32 0.0, %v1550
    %v1552 = vpop.f32.mrb[0].mxu0
    %1553 = vdwg.mxu0
    %v1554 = vadd.f32 %v1495, %v1540
    %v1555 = vadd.f32 %v1496, %v1543
    %v1556 = vadd.f32 %v1497, %v1548
    %v1557 = vadd.f32 %v1498, %v1551
    %v1559 = vsel %vm736, %v1103, 0
    %v1562 = vsel %vm736, %v1104, 0
    %1564 = vmatprep.subr.bf16.mxu0 0
    %1565 = vmatpush1.bf16.msra.mxu0 %v1151
    %1566 = vmatprep.subr.bf16.mxu0 0
    %1567 = vmatpush1.bf16.msra.mxu0 %v1152
    %1568 = vmatprep.subr.bf16.mxu0 0
    %1569 = vmatpush1.bf16.msra.mxu0 0
    %1570 = vmatprep.subr.bf16.mxu0 0
    %1571 = vmatpush1.bf16.msra.mxu0 0
    %1572 = vmatprep.subr.bf16.mxu0 0
    %1573 = vmatpush1.bf16.msra.mxu0 0
    %1574 = vmatprep.subr.bf16.mxu0 0
    %1575 = vmatpush1.bf16.msra.mxu0 0
    %1576 = vmatprep.subr.bf16.mxu0 0
    %1577 = vmatpush1.bf16.msra.mxu0 0
    %1578 = vmatprep.subr.bf16.mxu0 0
    %1579 = vmatpush1.bf16.msra.mxu0 0
    %1580 = vmatprep.subr.bf16.mxu0 0
    %1581 = vmatpush1.bf16.msra.mxu0 0
    %1582 = vmatprep.subr.bf16.mxu0 0
    %1583 = vmatpush1.bf16.msra.mxu0 0
    %1584 = vmatprep.subr.bf16.mxu0 0
    %1585 = vmatpush1.bf16.msra.mxu0 0
    %1586 = vmatprep.subr.bf16.mxu0 0
    %1587 = vmatpush1.bf16.msra.mxu0 0
    %1588 = vmatprep.subr.bf16.mxu0 0
    %1589 = vmatpush1.bf16.msra.mxu0 0
    %1590 = vmatprep.subr.bf16.mxu0 0
    %1591 = vmatpush1.bf16.msra.mxu0 0
    %1592 = vmatprep.subr.bf16.mxu0 0
    %1593 = vmatpush1.bf16.msra.mxu0 0
    %1594 = vmatprep.subr.bf16.mxu0 0
    %1595 = vmatpush1.bf16.msra.mxu0 0
    %1596 = vmatprep.mubr.bf16.mxu0 0
    %1597 = vmatmul.mubr.bf16.gmra.mrb[0].mxu0 %v1559
    %v1598 = vpop.f32.mrb[0].mxu0
    %v1599 = vadd.f32 0.0, %v1598
    %v1600 = vpop.f32.mrb[0].mxu0
    %v1601 = vpop.f32.mrb[0].mxu0
    %v1602 = vadd.f32 0.0, %v1601
    %v1603 = vpop.f32.mrb[0].mxu0
    %1604 = vmatprep.mubr.bf16.mxu0 0
    %1605 = vmatmul.mubr.bf16.gmra.mrb[0].mxu0 %v1562
    %v1606 = vpop.f32.mrb[0].mxu0
    %v1607 = vadd.f32 0.0, %v1606
    %v1608 = vpop.f32.mrb[0].mxu0
    %v1609 = vpop.f32.mrb[0].mxu0
    %v1610 = vadd.f32 0.0, %v1609
    %v1611 = vpop.f32.mrb[0].mxu0
    %1612 = vdwg.mxu0
    %v1613 = vadd.f32 %v1554, %v1599
    %v1614 = vadd.f32 %v1555, %v1602
    %v1615 = vadd.f32 %v1556, %v1607
    %v1616 = vadd.f32 %v1557, %v1610
    %v1617 = vpack.c.bf16 %v1614, %v1613
    %v1618 = vpack.c.bf16 %v1616, %v1615
    %v1619 = vld [vmem:[#allocation10] sm:$0xf]
    %v1620 = vld [vmem:[#allocation10 + $0x4] sm:$0xf]
    %v1621 = vld [vmem:[#allocation10 + $0x8] sm:$0xf]
    %v1622 = vld [vmem:[#allocation10 + $0xc] sm:$0xf]
    %v1623 = vld [vmem:[#allocation10 + $0x10] sm:$0xf]
    %v1624 = vld [vmem:[#allocation10 + $0x14] sm:$0xf]
    %v1625 = vld [vmem:[#allocation10 + $0x18] sm:$0xf]
    %v1626 = vld [vmem:[#allocation10 + $0x1c] sm:$0xf]
    %v1627 = vld [vmem:[#allocation10 + $0x20] sm:$0xf]
    %v1628 = vld [vmem:[#allocation10 + $0x24] sm:$0xf]
    %v1629 = vld [vmem:[#allocation10 + $0x28] sm:$0xf]
    %v1630 = vld [vmem:[#allocation10 + $0x2c] sm:$0xf]
    %v1631 = vld [vmem:[#allocation10 + $0x30] sm:$0xf]
    %v1632 = vld [vmem:[#allocation10 + $0x34] sm:$0xf]
    %v1633 = vld [vmem:[#allocation10 + $0x38] sm:$0xf]
    %v1634 = vld [vmem:[#allocation10 + $0x3c] sm:$0xf]
    %v1635 = vld [vmem:[%s5] sm:$0x1]
    %v1637 = vlaneseq
    %v1638 = vshrl.u32 %v1637, 7
    %v1639 = vsub.s32 0, %v1638
    %v1640 = vrot.slane %v1635, %v1639
    %v1658 = vunpack.c.l.b16 %v1619
    %v1659 = vunpack.c.l.b16 %v1620
    %v1660 = vunpack.c.l.b16 %v1621
    %v1661 = vunpack.c.l.b16 %v1622
    %v1662 = vunpack.c.l.b16 %v1623
    %v1663 = vunpack.c.l.b16 %v1624
    %v1664 = vunpack.c.l.b16 %v1625
    %v1665 = vunpack.c.l.b16 %v1626
    %v1666 = vunpack.c.l.b16 %v1627
    %v1667 = vunpack.c.l.b16 %v1628
    %v1668 = vunpack.c.l.b16 %v1629
    %v1669 = vunpack.c.l.b16 %v1630
    %v1670 = vunpack.c.l.b16 %v1631
    %v1671 = vunpack.c.l.b16 %v1632
    %v1672 = vunpack.c.l.b16 %v1633
    %v1673 = vunpack.c.l.b16 %v1634
    %v1674 = vpack.c.b16 %v1659, %v1658
    %v1675 = vpack.c.b16 %v1661, %v1660
    %v1676 = vpack.c.b16 %v1663, %v1662
    %v1677 = vpack.c.b16 %v1665, %v1664
    %v1678 = vpack.c.b16 %v1667, %v1666
    %v1679 = vpack.c.b16 %v1669, %v1668
    %v1680 = vpack.c.b16 %v1671, %v1670
    %v1681 = vpack.c.b16 %v1673, %v1672
    %1690 = vmatprep.subr.bf16.mxu0 0
    %1691 = vmatpush1.bf16.msra.mxu0 %v1674
    %1692 = vmatprep.subr.bf16.mxu0 0
    %1693 = vmatpush1.bf16.msra.mxu0 %v1675
    %1694 = vmatprep.subr.bf16.mxu0 0
    %1695 = vmatpush1.bf16.msra.mxu0 %v1676
    %1696 = vmatprep.subr.bf16.mxu0 0
    %1697 = vmatpush1.bf16.msra.mxu0 %v1677
    %1698 = vmatprep.subr.bf16.mxu0 0
    %1699 = vmatpush1.bf16.msra.mxu0 %v1678
    %1700 = vmatprep.subr.bf16.mxu0 0
    %1701 = vmatpush1.bf16.msra.mxu0 %v1679
    %1702 = vmatprep.subr.bf16.mxu0 0
    %1703 = vmatpush1.bf16.msra.mxu0 %v1680
    %1704 = vmatprep.subr.bf16.mxu0 0
    %1705 = vmatpush1.bf16.msra.mxu0 %v1681
    %1706 = vmatprep.subr.bf16.mxu0 0
    %1707 = vmatpush1.bf16.msra.mxu0 0
    %1708 = vmatprep.subr.bf16.mxu0 0
    %1709 = vmatpush1.bf16.msra.mxu0 0
    %1710 = vmatprep.subr.bf16.mxu0 0
    %1711 = vmatpush1.bf16.msra.mxu0 0
    %1712 = vmatprep.subr.bf16.mxu0 0
    %1713 = vmatpush1.bf16.msra.mxu0 0
    %1714 = vmatprep.subr.bf16.mxu0 0
    %1715 = vmatpush1.bf16.msra.mxu0 0
    %1716 = vmatprep.subr.bf16.mxu0 0
    %1717 = vmatpush1.bf16.msra.mxu0 0
    %1718 = vmatprep.subr.bf16.mxu0 0
    %1719 = vmatpush1.bf16.msra.mxu0 0
    %1720 = vmatprep.subr.bf16.mxu0 0
    %1721 = vmatpush1.bf16.msra.mxu0 0
    %1722 = vmatprep.mubr.bf16.mxu0 0
    %1723 = vmatmul.mubr.bf16.gmra.mrb[0].mxu0 %v1617
    %v1724 = vpop.f32.mrb[0].mxu0
    %v1725 = vadd.f32 %v1640, %v1724
    %v1726 = vpop.f32.mrb[0].mxu0
    %v1727 = vpop.f32.mrb[0].mxu0
    %v1728 = vadd.f32 %v1640, %v1727
    %v1729 = vpop.f32.mrb[0].mxu0
    %1730 = vmatprep.mubr.bf16.mxu0 0
    %1731 = vmatmul.mubr.bf16.gmra.mrb[0].mxu0 %v1618
    %v1732 = vpop.f32.mrb[0].mxu0
    %v1733 = vadd.f32 %v1640, %v1732
    %v1734 = vpop.f32.mrb[0].mxu0
    %v1735 = vpop.f32.mrb[0].mxu0
    %v1736 = vadd.f32 %v1640, %v1735
    %v1737 = vpop.f32.mrb[0].mxu0
    %1738 = vdwg.mxu0
    %v1739 = vadd.f32 %v1725, %v130
    %v1740 = vadd.f32 %v1728, %v131
    %v1741 = vadd.f32 %v1733, %v132
    %v1742 = vadd.f32 %v1736, %v133
    %1743 = vadd.xlane.f32.xlu0 %v1739
    %v1744 = vpop.xlane.xlu0 %1743
    %1745 = vadd.xlane.f32.xlu0 %v1740
    %v1746 = vpop.xlane.xlu0 %1745
    %1747 = vadd.xlane.f32.xlu0 %v1741
    %v1748 = vpop.xlane.xlu0 %1747
    %1749 = vadd.xlane.f32.xlu0 %v1742
    %v1750 = vpop.xlane.xlu0 %1749
    %v1751 = vrcp.pop 128.0
    %v1752 = vmul.f32 %v1744, %v1751
    %v1753 = vmul.f32 %v1746, %v1751
    %v1754 = vmul.f32 %v1748, %v1751
    %v1755 = vmul.f32 %v1750, %v1751
    %v1756 = vsub.f32 %v1739, %v1752
    %v1757 = vsub.f32 %v1740, %v1753
    %v1758 = vsub.f32 %v1741, %v1754
    %v1759 = vsub.f32 %v1742, %v1755
    %v1760 = vmul.f32 %v1756, %v1756
    %v1761 = vmul.f32 %v1757, %v1757
    %v1762 = vmul.f32 %v1758, %v1758
    %v1763 = vmul.f32 %v1759, %v1759
    %1764 = vadd.xlane.f32.xlu0 %v1760
    %v1765 = vpop.xlane.xlu0 %1764
    %1766 = vadd.xlane.f32.xlu0 %v1761
    %v1767 = vpop.xlane.xlu0 %1766
    %1768 = vadd.xlane.f32.xlu0 %v1762
    %v1769 = vpop.xlane.xlu0 %1768
    %1770 = vadd.xlane.f32.xlu0 %v1763
    %v1771 = vpop.xlane.xlu0 %1770
    %v1772 = vmul.f32 %v1765, 0.007874016
    %v1773 = vmul.f32 %v1767, 0.007874016
    %v1774 = vmul.f32 %v1769, 0.007874016
    %v1775 = vmul.f32 %v1771, 0.007874016
    %v1776 = vrcp.pop %v1772
    %v1777 = vrcp.pop %v1773
    %v1778 = vrcp.pop %v1774
    %v1779 = vrcp.pop %v1775
    %v1780 = vmul.f32 %v1756, %v1776
    %v1781 = vmul.f32 %v1757, %v1777
    %v1782 = vmul.f32 %v1758, %v1778
    %v1783 = vmul.f32 %v1759, %v1779
    %v1784 = vpack.c.bf16 %v1781, %v1780
    %v1785 = vpack.c.bf16 %v1783, %v1782
    %v1786 = vld [vmem:[#allocation11] sm:$0xff]
    %v1787 = vld [vmem:[#allocation11 + $0x8] sm:$0xff]
    %v1788 = vld [vmem:[#allocation11 + $0x10] sm:$0xff]
    %v1789 = vld [vmem:[#allocation11 + $0x18] sm:$0xff]
    %v1790 = vld [vmem:[#allocation11 + $0x20] sm:$0xff]
    %v1791 = vld [vmem:[#allocation11 + $0x28] sm:$0xff]
    %v1792 = vld [vmem:[#allocation11 + $0x30] sm:$0xff]
    %v1793 = vld [vmem:[#allocation11 + $0x38] sm:$0xff]
    %v1794 = vld [vmem:[#allocation11 + $0x40] sm:$0xff]
    %v1795 = vld [vmem:[#allocation11 + $0x48] sm:$0xff]
    %v1796 = vld [vmem:[#allocation11 + $0x50] sm:$0xff]
    %v1797 = vld [vmem:[#allocation11 + $0x58] sm:$0xff]
    %v1798 = vld [vmem:[#allocation11 + $0x60] sm:$0xff]
    %v1799 = vld [vmem:[#allocation11 + $0x68] sm:$0xff]
    %v1800 = vld [vmem:[#allocation11 + $0x70] sm:$0xff]
    %v1801 = vld [vmem:[#allocation11 + $0x78] sm:$0xff]
    %v1802 = vld [vmem:[#allocation11 + $0x80] sm:$0xff]
    %v1803 = vld [vmem:[#allocation11 + $0x88] sm:$0xff]
    %v1804 = vld [vmem:[#allocation11 + $0x90] sm:$0xff]
    %v1805 = vld [vmem:[#allocation11 + $0x98] sm:$0xff]
    %v1806 = vld [vmem:[#allocation11 + $0xa0] sm:$0xff]
    %v1807 = vld [vmem:[#allocation11 + $0xa8] sm:$0xff]
    %v1808 = vld [vmem:[#allocation11 + $0xb0] sm:$0xff]
    %v1809 = vld [vmem:[#allocation11 + $0xb8] sm:$0xff]
    %v1810 = vld [vmem:[#allocation11 + $0xc0] sm:$0xff]
    %v1811 = vld [vmem:[#allocation11 + $0xc8] sm:$0xff]
    %v1812 = vld [vmem:[#allocation11 + $0xd0] sm:$0xff]
    %v1813 = vld [vmem:[#allocation11 + $0xd8] sm:$0xff]
    %v1814 = vld [vmem:[#allocation11 + $0xe0] sm:$0xff]
    %v1815 = vld [vmem:[#allocation11 + $0xe8] sm:$0xff]
    %v1816 = vld [vmem:[#allocation11 + $0xf0] sm:$0xff]
    %v1817 = vld [vmem:[#allocation11 + $0xf8] sm:$0xff]
    %v1818 = vld [vmem:[%s7] sm:$0xf]
    %v1820 = vlaneseq
    %v1821 = vshrl.u32 %v1820, 7
    %v1822 = vsub.s32 0, %v1821
    %v1823 = vrot.slane %v1818, %v1822
    %v1824 = vlaneseq
    %v1825 = vshrl.u32 %v1824, 7
    %v1826 = vsub.s32 1, %v1825
    %v1827 = vrot.slane %v1818, %v1826
    %v1828 = vlaneseq
    %v1829 = vshrl.u32 %v1828, 7
    %v1830 = vsub.s32 2, %v1829
    %v1831 = vrot.slane %v1818, %v1830
    %v1832 = vlaneseq
    %v1833 = vshrl.u32 %v1832, 7
    %v1834 = vsub.s32 3, %v1833
    %v1835 = vrot.slane %v1818, %v1834
    %v1872 = vunpack.c.l.b16 %v1786
    %v1873 = vunpack.c.h.b16 %v1786
    %v1874 = vunpack.c.l.b16 %v1787
    %v1875 = vunpack.c.h.b16 %v1787
    %v1876 = vunpack.c.l.b16 %v1788
    %v1877 = vunpack.c.h.b16 %v1788
    %v1878 = vunpack.c.l.b16 %v1789
    %v1879 = vunpack.c.h.b16 %v1789
    %v1880 = vunpack.c.l.b16 %v1790
    %v1881 = vunpack.c.h.b16 %v1790
    %v1882 = vunpack.c.l.b16 %v1791
    %v1883 = vunpack.c.h.b16 %v1791
    %v1884 = vunpack.c.l.b16 %v1792
    %v1885 = vunpack.c.h.b16 %v1792
    %v1886 = vunpack.c.l.b16 %v1793
    %v1887 = vunpack.c.h.b16 %v1793
    %v1888 = vunpack.c.l.b16 %v1794
    %v1889 = vunpack.c.h.b16 %v1794
    %v1890 = vunpack.c.l.b16 %v1795
    %v1891 = vunpack.c.h.b16 %v1795
    %v1892 = vunpack.c.l.b16 %v1796
    %v1893 = vunpack.c.h.b16 %v1796
    %v1894 = vunpack.c.l.b16 %v1797
    %v1895 = vunpack.c.h.b16 %v1797
    %v1896 = vunpack.c.l.b16 %v1798
    %v1897 = vunpack.c.h.b16 %v1798
    %v1898 = vunpack.c.l.b16 %v1799
    %v1899 = vunpack.c.h.b16 %v1799
    %v1900 = vunpack.c.l.b16 %v1800
    %v1901 = vunpack.c.h.b16 %v1800
    %v1902 = vunpack.c.l.b16 %v1801
    %v1903 = vunpack.c.h.b16 %v1801
    %v1904 = vunpack.c.l.b16 %v1802
    %v1905 = vunpack.c.h.b16 %v1802
    %v1906 = vunpack.c.l.b16 %v1803
    %v1907 = vunpack.c.h.b16 %v1803
    %v1908 = vunpack.c.l.b16 %v1804
    %v1909 = vunpack.c.h.b16 %v1804
    %v1910 = vunpack.c.l.b16 %v1805
    %v1911 = vunpack.c.h.b16 %v1805
    %v1912 = vunpack.c.l.b16 %v1806
    %v1913 = vunpack.c.h.b16 %v1806
    %v1914 = vunpack.c.l.b16 %v1807
    %v1915 = vunpack.c.h.b16 %v1807
    %v1916 = vunpack.c.l.b16 %v1808
    %v1917 = vunpack.c.h.b16 %v1808
    %v1918 = vunpack.c.l.b16 %v1809
    %v1919 = vunpack.c.h.b16 %v1809
    %v1920 = vunpack.c.l.b16 %v1810
    %v1921 = vunpack.c.h.b16 %v1810
    %v1922 = vunpack.c.l.b16 %v1811
    %v1923 = vunpack.c.h.b16 %v1811
    %v1924 = vunpack.c.l.b16 %v1812
    %v1925 = vunpack.c.h.b16 %v1812
    %v1926 = vunpack.c.l.b16 %v1813
    %v1927 = vunpack.c.h.b16 %v1813
    %v1928 = vunpack.c.l.b16 %v1814
    %v1929 = vunpack.c.h.b16 %v1814
    %v1930 = vunpack.c.l.b16 %v1815
    %v1931 = vunpack.c.h.b16 %v1815
    %v1932 = vunpack.c.l.b16 %v1816
    %v1933 = vunpack.c.h.b16 %v1816
    %v1934 = vunpack.c.l.b16 %v1817
    %v1935 = vunpack.c.h.b16 %v1817
    %v1936 = vpack.c.b16 %v1876, %v1872
    %v1937 = vpack.c.b16 %v1877, %v1873
    %v1938 = vpack.c.b16 %v1878, %v1874
    %v1939 = vpack.c.b16 %v1879, %v1875
    %v1940 = vpack.c.b16 %v1884, %v1880
    %v1941 = vpack.c.b16 %v1885, %v1881
    %v1942 = vpack.c.b16 %v1886, %v1882
    %v1943 = vpack.c.b16 %v1887, %v1883
    %v1944 = vpack.c.b16 %v1892, %v1888
    %v1945 = vpack.c.b16 %v1893, %v1889
    %v1946 = vpack.c.b16 %v1894, %v1890
    %v1947 = vpack.c.b16 %v1895, %v1891
    %v1948 = vpack.c.b16 %v1900, %v1896
    %v1949 = vpack.c.b16 %v1901, %v1897
    %v1950 = vpack.c.b16 %v1902, %v1898
    %v1951 = vpack.c.b16 %v1903, %v1899
    %v1952 = vpack.c.b16 %v1908, %v1904
    %v1953 = vpack.c.b16 %v1909, %v1905
    %v1954 = vpack.c.b16 %v1910, %v1906
    %v1955 = vpack.c.b16 %v1911, %v1907
    %v1956 = vpack.c.b16 %v1916, %v1912
    %v1957 = vpack.c.b16 %v1917, %v1913
    %v1958 = vpack.c.b16 %v1918, %v1914
    %v1959 = vpack.c.b16 %v1919, %v1915
    %v1960 = vpack.c.b16 %v1924, %v1920
    %v1961 = vpack.c.b16 %v1925, %v1921
    %v1962 = vpack.c.b16 %v1926, %v1922
    %v1963 = vpack.c.b16 %v1927, %v1923
    %v1964 = vpack.c.b16 %v1932, %v1928
    %v1965 = vpack.c.b16 %v1933, %v1929
    %v1966 = vpack.c.b16 %v1934, %v1930
    %v1967 = vpack.c.b16 %v1935, %v1931
    %2000 = vmatprep.subr.bf16.mxu0 %v1937
    %2001 = vmatpush1.bf16.msra.mxu0 %v1936
    %2002 = vmatprep.subr.bf16.mxu0 %v1941
    %2003 = vmatpush1.bf16.msra.mxu0 %v1940
    %2004 = vmatprep.subr.bf16.mxu0 %v1945
    %2005 = vmatpush1.bf16.msra.mxu0 %v1944
    %2006 = vmatprep.subr.bf16.mxu0 %v1949
    %2007 = vmatpush1.bf16.msra.mxu0 %v1948
    %2008 = vmatprep.subr.bf16.mxu0 %v1953
    %2009 = vmatpush1.bf16.msra.mxu0 %v1952
    %2010 = vmatprep.subr.bf16.mxu0 %v1957
    %2011 = vmatpush1.bf16.msra.mxu0 %v1956
    %2012 = vmatprep.subr.bf16.mxu0 %v1961
    %2013 = vmatpush1.bf16.msra.mxu0 %v1960
    %2014 = vmatprep.subr.bf16.mxu0 %v1965
    %2015 = vmatpush1.bf16.msra.mxu0 %v1964
    %2016 = vmatprep.subr.bf16.mxu0 0
    %2017 = vmatpush1.bf16.msra.mxu0 0
    %2018 = vmatprep.subr.bf16.mxu0 0
    %2019 = vmatpush1.bf16.msra.mxu0 0
    %2020 = vmatprep.subr.bf16.mxu0 0
    %2021 = vmatpush1.bf16.msra.mxu0 0
    %2022 = vmatprep.subr.bf16.mxu0 0
    %2023 = vmatpush1.bf16.msra.mxu0 0
    %2024 = vmatprep.subr.bf16.mxu0 0
    %2025 = vmatpush1.bf16.msra.mxu0 0
    %2026 = vmatprep.subr.bf16.mxu0 0
    %2027 = vmatpush1.bf16.msra.mxu0 0
    %2028 = vmatprep.subr.bf16.mxu0 0
    %2029 = vmatpush1.bf16.msra.mxu0 0
    %2030 = vmatprep.subr.bf16.mxu0 0
    %2031 = vmatpush1.bf16.msra.mxu0 0
    %2032 = vmatprep.mubr.bf16.mxu0 0
    %2033 = vmatmul.mubr.bf16.gmra.mrb[0].mxu0 %v1784
    %v2034 = vpop.f32.mrb[0].mxu0
    %v2035 = vadd.f32 %v1823, %v2034
    %v2036 = vpop.f32.mrb[0].mxu0
    %v2037 = vadd.f32 %v1827, %v2036
    %v2038 = vpop.f32.mrb[0].mxu0
    %v2039 = vadd.f32 %v1823, %v2038
    %v2040 = vpop.f32.mrb[0].mxu0
    %v2041 = vadd.f32 %v1827, %v2040
    %2042 = vmatprep.mubr.bf16.mxu0 0
    %2043 = vmatmul.mubr.bf16.gmra.mrb[0].mxu0 %v1785
    %v2044 = vpop.f32.mrb[0].mxu0
    %v2045 = vadd.f32 %v1823, %v2044
    %v2046 = vpop.f32.mrb[0].mxu0
    %v2047 = vadd.f32 %v1827, %v2046
    %v2048 = vpop.f32.mrb[0].mxu0
    %v2049 = vadd.f32 %v1823, %v2048
    %v2050 = vpop.f32.mrb[0].mxu0
    %v2051 = vadd.f32 %v1827, %v2050
    %2052 = vdwg.mxu0
    %2053 = vmatprep.subr.bf16.mxu0 %v1939
    %2054 = vmatpush1.bf16.msra.mxu0 %v1938
    %2055 = vmatprep.subr.bf16.mxu0 %v1943
    %2056 = vmatpush1.bf16.msra.mxu0 %v1942
    %2057 = vmatprep.subr.bf16.mxu0 %v1947
    %2058 = vmatpush1.bf16.msra.mxu0 %v1946
    %2059 = vmatprep.subr.bf16.mxu0 %v1951
    %2060 = vmatpush1.bf16.msra.mxu0 %v1950
    %2061 = vmatprep.subr.bf16.mxu0 %v1955
    %2062 = vmatpush1.bf16.msra.mxu0 %v1954
    %2063 = vmatprep.subr.bf16.mxu0 %v1959
    %2064 = vmatpush1.bf16.msra.mxu0 %v1958
    %2065 = vmatprep.subr.bf16.mxu0 %v1963
    %2066 = vmatpush1.bf16.msra.mxu0 %v1962
    %2067 = vmatprep.subr.bf16.mxu0 %v1967
    %2068 = vmatpush1.bf16.msra.mxu0 %v1966
    %2069 = vmatprep.subr.bf16.mxu0 0
    %2070 = vmatpush1.bf16.msra.mxu0 0
    %2071 = vmatprep.subr.bf16.mxu0 0
    %2072 = vmatpush1.bf16.msra.mxu0 0
    %2073 = vmatprep.subr.bf16.mxu0 0
    %2074 = vmatpush1.bf16.msra.mxu0 0
    %2075 = vmatprep.subr.bf16.mxu0 0
    %2076 = vmatpush1.bf16.msra.mxu0 0
    %2077 = vmatprep.subr.bf16.mxu0 0
    %2078 = vmatpush1.bf16.msra.mxu0 0
    %2079 = vmatprep.subr.bf16.mxu0 0
    %2080 = vmatpush1.bf16.msra.mxu0 0
    %2081 = vmatprep.subr.bf16.mxu0 0
    %2082 = vmatpush1.bf16.msra.mxu0 0
    %2083 = vmatprep.subr.bf16.mxu0 0
    %2084 = vmatpush1.bf16.msra.mxu0 0
    %2085 = vmatprep.mubr.bf16.mxu0 0
    %2086 = vmatmul.mubr.bf16.gmra.mrb[0].mxu0 %v1784
    %v2087 = vpop.f32.mrb[0].mxu0
    %v2088 = vadd.f32 %v1831, %v2087
    %v2089 = vpop.f32.mrb[0].mxu0
    %v2090 = vadd.f32 %v1835, %v2089
    %v2091 = vpop.f32.mrb[0].mxu0
    %v2092 = vadd.f32 %v1831, %v2091
    %v2093 = vpop.f32.mrb[0].mxu0
    %v2094 = vadd.f32 %v1835, %v2093
    %2095 = vmatprep.mubr.bf16.mxu0 0
    %2096 = vmatmul.mubr.bf16.gmra.mrb[0].mxu0 %v1785
    %v2097 = vpop.f32.mrb[0].mxu0
    %v2098 = vadd.f32 %v1831, %v2097
    %v2099 = vpop.f32.mrb[0].mxu0
    %v2100 = vadd.f32 %v1835, %v2099
    %v2101 = vpop.f32.mrb[0].mxu0
    %v2102 = vadd.f32 %v1831, %v2101
    %v2103 = vpop.f32.mrb[0].mxu0
    %v2104 = vadd.f32 %v1835, %v2103
    %2105 = vdwg.mxu0
    %v2106 = vmax.f32 %v2035, 0.0
    %v2107 = vmax.f32 %v2037, 0.0
    %v2108 = vmax.f32 %v2088, 0.0
    %v2109 = vmax.f32 %v2090, 0.0
    %v2110 = vmax.f32 %v2039, 0.0
    %v2111 = vmax.f32 %v2041, 0.0
    %v2112 = vmax.f32 %v2092, 0.0
    %v2113 = vmax.f32 %v2094, 0.0
    %v2114 = vmax.f32 %v2045, 0.0
    %v2115 = vmax.f32 %v2047, 0.0
    %v2116 = vmax.f32 %v2098, 0.0
    %v2117 = vmax.f32 %v2100, 0.0
    %v2118 = vmax.f32 %v2049, 0.0
    %v2119 = vmax.f32 %v2051, 0.0
    %v2120 = vmax.f32 %v2102, 0.0
    %v2121 = vmax.f32 %v2104, 0.0
    %v2122 = vpack.c.bf16 %v2110, %v2106
    %v2123 = vpack.c.bf16 %v2111, %v2107
    %v2124 = vpack.c.bf16 %v2112, %v2108
    %v2125 = vpack.c.bf16 %v2113, %v2109
    %v2126 = vpack.c.bf16 %v2118, %v2114
    %v2127 = vpack.c.bf16 %v2119, %v2115
    %v2128 = vpack.c.bf16 %v2120, %v2116
    %v2129 = vpack.c.bf16 %v2121, %v2117
    %v2130 = vld [vmem:[#allocation13] sm:$0xf]
    %v2131 = vld [vmem:[#allocation13 + $0x4] sm:$0xf]
    %v2132 = vld [vmem:[#allocation13 + $0x8] sm:$0xf]
    %v2133 = vld [vmem:[#allocation13 + $0xc] sm:$0xf]
    %v2134 = vld [vmem:[#allocation13 + $0x10] sm:$0xf]
    %v2135 = vld [vmem:[#allocation13 + $0x14] sm:$0xf]
    %v2136 = vld [vmem:[#allocation13 + $0x18] sm:$0xf]
    %v2137 = vld [vmem:[#allocation13 + $0x1c] sm:$0xf]
    %v2138 = vld [vmem:[#allocation13 + $0x20] sm:$0xf]
    %v2139 = vld [vmem:[#allocation13 + $0x24] sm:$0xf]
    %v2140 = vld [vmem:[#allocation13 + $0x28] sm:$0xf]
    %v2141 = vld [vmem:[#allocation13 + $0x2c] sm:$0xf]
    %v2142 = vld [vmem:[#allocation13 + $0x30] sm:$0xf]
    %v2143 = vld [vmem:[#allocation13 + $0x34] sm:$0xf]
    %v2144 = vld [vmem:[#allocation13 + $0x38] sm:$0xf]
    %v2145 = vld [vmem:[#allocation13 + $0x3c] sm:$0xf]
    %v2146 = vld [vmem:[#allocation13 + $0x40] sm:$0xf]
    %v2147 = vld [vmem:[#allocation13 + $0x44] sm:$0xf]
    %v2148 = vld [vmem:[#allocation13 + $0x48] sm:$0xf]
    %v2149 = vld [vmem:[#allocation13 + $0x4c] sm:$0xf]
    %v2150 = vld [vmem:[#allocation13 + $0x50] sm:$0xf]
    %v2151 = vld [vmem:[#allocation13 + $0x54] sm:$0xf]
    %v2152 = vld [vmem:[#allocation13 + $0x58] sm:$0xf]
    %v2153 = vld [vmem:[#allocation13 + $0x5c] sm:$0xf]
    %v2154 = vld [vmem:[#allocation13 + $0x60] sm:$0xf]
    %v2155 = vld [vmem:[#allocation13 + $0x64] sm:$0xf]
    %v2156 = vld [vmem:[#allocation13 + $0x68] sm:$0xf]
    %v2157 = vld [vmem:[#allocation13 + $0x6c] sm:$0xf]
    %v2158 = vld [vmem:[#allocation13 + $0x70] sm:$0xf]
    %v2159 = vld [vmem:[#allocation13 + $0x74] sm:$0xf]
    %v2160 = vld [vmem:[#allocation13 + $0x78] sm:$0xf]
    %v2161 = vld [vmem:[#allocation13 + $0x7c] sm:$0xf]
    %v2162 = vld [vmem:[#allocation13 + $0x80] sm:$0xf]
    %v2163 = vld [vmem:[#allocation13 + $0x84] sm:$0xf]
    %v2164 = vld [vmem:[#allocation13 + $0x88] sm:$0xf]
    %v2165 = vld [vmem:[#allocation13 + $0x8c] sm:$0xf]
    %v2166 = vld [vmem:[#allocation13 + $0x90] sm:$0xf]
    %v2167 = vld [vmem:[#allocation13 + $0x94] sm:$0xf]
    %v2168 = vld [vmem:[#allocation13 + $0x98] sm:$0xf]
    %v2169 = vld [vmem:[#allocation13 + $0x9c] sm:$0xf]
    %v2170 = vld [vmem:[#allocation13 + $0xa0] sm:$0xf]
    %v2171 = vld [vmem:[#allocation13 + $0xa4] sm:$0xf]
    %v2172 = vld [vmem:[#allocation13 + $0xa8] sm:$0xf]
    %v2173 = vld [vmem:[#allocation13 + $0xac] sm:$0xf]
    %v2174 = vld [vmem:[#allocation13 + $0xb0] sm:$0xf]
    %v2175 = vld [vmem:[#allocation13 + $0xb4] sm:$0xf]
    %v2176 = vld [vmem:[#allocation13 + $0xb8] sm:$0xf]
    %v2177 = vld [vmem:[#allocation13 + $0xbc] sm:$0xf]
    %v2178 = vld [vmem:[#allocation13 + $0xc0] sm:$0xf]
    %v2179 = vld [vmem:[#allocation13 + $0xc4] sm:$0xf]
    %v2180 = vld [vmem:[#allocation13 + $0xc8] sm:$0xf]
    %v2181 = vld [vmem:[#allocation13 + $0xcc] sm:$0xf]
    %v2182 = vld [vmem:[#allocation13 + $0xd0] sm:$0xf]
    %v2183 = vld [vmem:[#allocation13 + $0xd4] sm:$0xf]
    %v2184 = vld [vmem:[#allocation13 + $0xd8] sm:$0xf]
    %v2185 = vld [vmem:[#allocation13 + $0xdc] sm:$0xf]
    %v2186 = vld [vmem:[#allocation13 + $0xe0] sm:$0xf]
    %v2187 = vld [vmem:[#allocation13 + $0xe4] sm:$0xf]
    %v2188 = vld [vmem:[#allocation13 + $0xe8] sm:$0xf]
    %v2189 = vld [vmem:[#allocation13 + $0xec] sm:$0xf]
    %v2190 = vld [vmem:[#allocation13 + $0xf0] sm:$0xf]
    %v2191 = vld [vmem:[#allocation13 + $0xf4] sm:$0xf]
    %v2192 = vld [vmem:[#allocation13 + $0xf8] sm:$0xf]
    %v2193 = vld [vmem:[#allocation13 + $0xfc] sm:$0xf]
    %v2194 = vld [vmem:[%s9] sm:$0x1]
    %v2196 = vlaneseq
    %v2197 = vshrl.u32 %v2196, 7
    %v2198 = vsub.s32 0, %v2197
    %v2199 = vrot.slane %v2194, %v2198
    %v2265 = vunpack.c.l.b16 %v2130
    %v2266 = vunpack.c.l.b16 %v2131
    %v2267 = vunpack.c.l.b16 %v2132
    %v2268 = vunpack.c.l.b16 %v2133
    %v2269 = vunpack.c.l.b16 %v2134
    %v2270 = vunpack.c.l.b16 %v2135
    %v2271 = vunpack.c.l.b16 %v2136
    %v2272 = vunpack.c.l.b16 %v2137
    %v2273 = vunpack.c.l.b16 %v2138
    %v2274 = vunpack.c.l.b16 %v2139
    %v2275 = vunpack.c.l.b16 %v2140
    %v2276 = vunpack.c.l.b16 %v2141
    %v2277 = vunpack.c.l.b16 %v2142
    %v2278 = vunpack.c.l.b16 %v2143
    %v2279 = vunpack.c.l.b16 %v2144
    %v2280 = vunpack.c.l.b16 %v2145
    %v2281 = vunpack.c.l.b16 %v2146
    %v2282 = vunpack.c.l.b16 %v2147
    %v2283 = vunpack.c.l.b16 %v2148
    %v2284 = vunpack.c.l.b16 %v2149
    %v2285 = vunpack.c.l.b16 %v2150
    %v2286 = vunpack.c.l.b16 %v2151
    %v2287 = vunpack.c.l.b16 %v2152
    %v2288 = vunpack.c.l.b16 %v2153
    %v2289 = vunpack.c.l.b16 %v2154
    %v2290 = vunpack.c.l.b16 %v2155
    %v2291 = vunpack.c.l.b16 %v2156
    %v2292 = vunpack.c.l.b16 %v2157
    %v2293 = vunpack.c.l.b16 %v2158
    %v2294 = vunpack.c.l.b16 %v2159
    %v2295 = vunpack.c.l.b16 %v2160
    %v2296 = vunpack.c.l.b16 %v2161
    %v2297 = vunpack.c.l.b16 %v2162
    %v2298 = vunpack.c.l.b16 %v2163
    %v2299 = vunpack.c.l.b16 %v2164
    %v2300 = vunpack.c.l.b16 %v2165
    %v2301 = vunpack.c.l.b16 %v2166
    %v2302 = vunpack.c.l.b16 %v2167
    %v2303 = vunpack.c.l.b16 %v2168
    %v2304 = vunpack.c.l.b16 %v2169
    %v2305 = vunpack.c.l.b16 %v2170
    %v2306 = vunpack.c.l.b16 %v2171
    %v2307 = vunpack.c.l.b16 %v2172
    %v2308 = vunpack.c.l.b16 %v2173
    %v2309 = vunpack.c.l.b16 %v2174
    %v2310 = vunpack.c.l.b16 %v2175
    %v2311 = vunpack.c.l.b16 %v2176
    %v2312 = vunpack.c.l.b16 %v2177
    %v2313 = vunpack.c.l.b16 %v2178
    %v2314 = vunpack.c.l.b16 %v2179
    %v2315 = vunpack.c.l.b16 %v2180
    %v2316 = vunpack.c.l.b16 %v2181
    %v2317 = vunpack.c.l.b16 %v2182
    %v2318 = vunpack.c.l.b16 %v2183
    %v2319 = vunpack.c.l.b16 %v2184
    %v2320 = vunpack.c.l.b16 %v2185
    %v2321 = vunpack.c.l.b16 %v2186
    %v2322 = vunpack.c.l.b16 %v2187
    %v2323 = vunpack.c.l.b16 %v2188
    %v2324 = vunpack.c.l.b16 %v2189
    %v2325 = vunpack.c.l.b16 %v2190
    %v2326 = vunpack.c.l.b16 %v2191
    %v2327 = vunpack.c.l.b16 %v2192
    %v2328 = vunpack.c.l.b16 %v2193
    %v2329 = vpack.c.b16 %v2266, %v2265
    %v2330 = vpack.c.b16 %v2268, %v2267
    %v2331 = vpack.c.b16 %v2270, %v2269
    %v2332 = vpack.c.b16 %v2272, %v2271
    %v2333 = vpack.c.b16 %v2274, %v2273
    %v2334 = vpack.c.b16 %v2276, %v2275
    %v2335 = vpack.c.b16 %v2278, %v2277
    %v2336 = vpack.c.b16 %v2280, %v2279
    %v2337 = vpack.c.b16 %v2282, %v2281
    %v2338 = vpack.c.b16 %v2284, %v2283
    %v2339 = vpack.c.b16 %v2286, %v2285
    %v2340 = vpack.c.b16 %v2288, %v2287
    %v2341 = vpack.c.b16 %v2290, %v2289
    %v2342 = vpack.c.b16 %v2292, %v2291
    %v2343 = vpack.c.b16 %v2294, %v2293
    %v2344 = vpack.c.b16 %v2296, %v2295
    %v2345 = vpack.c.b16 %v2298, %v2297
    %v2346 = vpack.c.b16 %v2300, %v2299
    %v2347 = vpack.c.b16 %v2302, %v2301
    %v2348 = vpack.c.b16 %v2304, %v2303
    %v2349 = vpack.c.b16 %v2306, %v2305
    %v2350 = vpack.c.b16 %v2308, %v2307
    %v2351 = vpack.c.b16 %v2310, %v2309
    %v2352 = vpack.c.b16 %v2312, %v2311
    %v2353 = vpack.c.b16 %v2314, %v2313
    %v2354 = vpack.c.b16 %v2316, %v2315
    %v2355 = vpack.c.b16 %v2318, %v2317
    %v2356 = vpack.c.b16 %v2320, %v2319
    %v2357 = vpack.c.b16 %v2322, %v2321
    %v2358 = vpack.c.b16 %v2324, %v2323
    %v2359 = vpack.c.b16 %v2326, %v2325
    %v2360 = vpack.c.b16 %v2328, %v2327
    %2393 = vmatprep.subr.bf16.mxu0 0
    %2394 = vmatpush1.bf16.msra.mxu0 %v2329
    %2395 = vmatprep.subr.bf16.mxu0 0
    %2396 = vmatpush1.bf16.msra.mxu0 %v2330
    %2397 = vmatprep.subr.bf16.mxu0 0
    %2398 = vmatpush1.bf16.msra.mxu0 %v2331
    %2399 = vmatprep.subr.bf16.mxu0 0
    %2400 = vmatpush1.bf16.msra.mxu0 %v2332
    %2401 = vmatprep.subr.bf16.mxu0 0
    %2402 = vmatpush1.bf16.msra.mxu0 %v2333
    %2403 = vmatprep.subr.bf16.mxu0 0
    %2404 = vmatpush1.bf16.msra.mxu0 %v2334
    %2405 = vmatprep.subr.bf16.mxu0 0
    %2406 = vmatpush1.bf16.msra.mxu0 %v2335
    %2407 = vmatprep.subr.bf16.mxu0 0
    %2408 = vmatpush1.bf16.msra.mxu0 %v2336
    %2409 = vmatprep.subr.bf16.mxu0 0
    %2410 = vmatpush1.bf16.msra.mxu0 %v2337
    %2411 = vmatprep.subr.bf16.mxu0 0
    %2412 = vmatpush1.bf16.msra.mxu0 %v2338
    %2413 = vmatprep.subr.bf16.mxu0 0
    %2414 = vmatpush1.bf16.msra.mxu0 %v2339
    %2415 = vmatprep.subr.bf16.mxu0 0
    %2416 = vmatpush1.bf16.msra.mxu0 %v2340
    %2417 = vmatprep.subr.bf16.mxu0 0
    %2418 = vmatpush1.bf16.msra.mxu0 %v2341
    %2419 = vmatprep.subr.bf16.mxu0 0
    %2420 = vmatpush1.bf16.msra.mxu0 %v2342
    %2421 = vmatprep.subr.bf16.mxu0 0
    %2422 = vmatpush1.bf16.msra.mxu0 %v2343
    %2423 = vmatprep.subr.bf16.mxu0 0
    %2424 = vmatpush1.bf16.msra.mxu0 %v2344
    %2425 = vmatprep.mubr.bf16.mxu0 %v2123
    %2426 = vmatmul.mubr.bf16.gmra.mrb[0].mxu0 %v2122
    %v2427 = vpop.f32.mrb[0].mxu0
    %v2428 = vadd.f32 %v2199, %v2427
    %v2429 = vpop.f32.mrb[0].mxu0
    %v2430 = vpop.f32.mrb[0].mxu0
    %v2431 = vadd.f32 %v2199, %v2430
    %v2432 = vpop.f32.mrb[0].mxu0
    %2433 = vmatprep.mubr.bf16.mxu0 %v2127
    %2434 = vmatmul.mubr.bf16.gmra.mrb[0].mxu0 %v2126
    %v2435 = vpop.f32.mrb[0].mxu0
    %v2436 = vadd.f32 %v2199, %v2435
    %v2437 = vpop.f32.mrb[0].mxu0
    %v2438 = vpop.f32.mrb[0].mxu0
    %v2439 = vadd.f32 %v2199, %v2438
    %v2440 = vpop.f32.mrb[0].mxu0
    %2441 = vdwg.mxu0
    %2442 = vmatprep.subr.bf16.mxu0 0
    %2443 = vmatpush1.bf16.msra.mxu0 %v2345
    %2444 = vmatprep.subr.bf16.mxu0 0
    %2445 = vmatpush1.bf16.msra.mxu0 %v2346
    %2446 = vmatprep.subr.bf16.mxu0 0
    %2447 = vmatpush1.bf16.msra.mxu0 %v2347
    %2448 = vmatprep.subr.bf16.mxu0 0
    %2449 = vmatpush1.bf16.msra.mxu0 %v2348
    %2450 = vmatprep.subr.bf16.mxu0 0
    %2451 = vmatpush1.bf16.msra.mxu0 %v2349
    %2452 = vmatprep.subr.bf16.mxu0 0
    %2453 = vmatpush1.bf16.msra.mxu0 %v2350
    %2454 = vmatprep.subr.bf16.mxu0 0
    %2455 = vmatpush1.bf16.msra.mxu0 %v2351
    %2456 = vmatprep.subr.bf16.mxu0 0
    %2457 = vmatpush1.bf16.msra.mxu0 %v2352
    %2458 = vmatprep.subr.bf16.mxu0 0
    %2459 = vmatpush1.bf16.msra.mxu0 %v2353
    %2460 = vmatprep.subr.bf16.mxu0 0
    %2461 = vmatpush1.bf16.msra.mxu0 %v2354
    %2462 = vmatprep.subr.bf16.mxu0 0
    %2463 = vmatpush1.bf16.msra.mxu0 %v2355
    %2464 = vmatprep.subr.bf16.mxu0 0
    %2465 = vmatpush1.bf16.msra.mxu0 %v2356
    %2466 = vmatprep.subr.bf16.mxu0 0
    %2467 = vmatpush1.bf16.msra.mxu0 %v2357
    %2468 = vmatprep.subr.bf16.mxu0 0
    %2469 = vmatpush1.bf16.msra.mxu0 %v2358
    %2470 = vmatprep.subr.bf16.mxu0 0
    %2471 = vmatpush1.bf16.msra.mxu0 %v2359
    %2472 = vmatprep.subr.bf16.mxu0 0
    %2473 = vmatpush1.bf16.msra.mxu0 %v2360
    %2474 = vmatprep.mubr.bf16.mxu0 %v2125
    %2475 = vmatmul.mubr.bf16.gmra.mrb[0].mxu0 %v2124
    %v2476 = vpop.f32.mrb[0].mxu0
    %v2477 = vadd.f32 %v2428, %v2476
    %v2478 = vpop.f32.mrb[0].mxu0
    %v2479 = vpop.f32.mrb[0].mxu0
    %v2480 = vadd.f32 %v2431, %v2479
    %v2481 = vpop.f32.mrb[0].mxu0
    %2482 = vmatprep.mubr.bf16.mxu0 %v2129
    %2483 = vmatmul.mubr.bf16.gmra.mrb[0].mxu0 %v2128
    %v2484 = vpop.f32.mrb[0].mxu0
    %v2485 = vadd.f32 %v2436, %v2484
    %v2486 = vpop.f32.mrb[0].mxu0
    %v2487 = vpop.f32.mrb[0].mxu0
    %v2488 = vadd.f32 %v2439, %v2487
    %v2489 = vpop.f32.mrb[0].mxu0
    %2490 = vdwg.mxu0
    %v2491 = vadd.f32 %v2477, %v1780
    %v2492 = vadd.f32 %v2480, %v1781
    %v2493 = vadd.f32 %v2485, %v1782
    %v2494 = vadd.f32 %v2488, %v1783
    %2495 = vadd.xlane.f32.xlu0 %v2491
    %v2496 = vpop.xlane.xlu0 %2495
    %2497 = vadd.xlane.f32.xlu0 %v2492
    %v2498 = vpop.xlane.xlu0 %2497
    %2499 = vadd.xlane.f32.xlu0 %v2493
    %v2500 = vpop.xlane.xlu0 %2499
    %2501 = vadd.xlane.f32.xlu0 %v2494
    %v2502 = vpop.xlane.xlu0 %2501
    %v2503 = vmul.f32 %v2496, %v1751
    %v2504 = vmul.f32 %v2498, %v1751
    %v2505 = vmul.f32 %v2500, %v1751
    %v2506 = vmul.f32 %v2502, %v1751
    %v2507 = vsub.f32 %v2491, %v2503
    %v2508 = vsub.f32 %v2492, %v2504
    %v2509 = vsub.f32 %v2493, %v2505
    %v2510 = vsub.f32 %v2494, %v2506
    %v2511 = vmul.f32 %v2507, %v2507
    %v2512 = vmul.f32 %v2508, %v2508
    %v2513 = vmul.f32 %v2509, %v2509
    %v2514 = vmul.f32 %v2510, %v2510
    %2515 = vadd.xlane.f32.xlu0 %v2511
    %v2516 = vpop.xlane.xlu0 %2515
    %2517 = vadd.xlane.f32.xlu0 %v2512
    %v2518 = vpop.xlane.xlu0 %2517
    %2519 = vadd.xlane.f32.xlu0 %v2513
    %v2520 = vpop.xlane.xlu0 %2519
    %2521 = vadd.xlane.f32.xlu0 %v2514
    %v2522 = vpop.xlane.xlu0 %2521
    %v2523 = vmul.f32 %v2516, 0.007874016
    %v2524 = vmul.f32 %v2518, 0.007874016
    %v2525 = vmul.f32 %v2520, 0.007874016
    %v2526 = vmul.f32 %v2522, 0.007874016
    %v2527 = vrcp.pop %v2523
    %v2528 = vrcp.pop %v2524
    %v2529 = vrcp.pop %v2525
    %v2530 = vrcp.pop %v2526
    %v2531 = vmul.f32 %v2507, %v2527
    %v2532 = vmul.f32 %v2508, %v2528
    %v2533 = vmul.f32 %v2509, %v2529
    %v2534 = vmul.f32 %v2510, %v2530
    %2535 = vst [vmem:[#allocation14] sm:$0xff] %v2531
    %2536 = vst [vmem:[#allocation14 + $0x8] sm:$0xff] %v2532
    %2537 = vst [vmem:[#allocation14 + $0x10] sm:$0xff] %v2533
    %2538 = vst [vmem:[#allocation14 + $0x18] sm:$0xff] %v2534
    // Predicated region
    $region70: #{tpu_custom_call.1} parent=1 // pred_check
      _
    $region71: #{tpu_custom_call.1} parent=1 // pred_check_branch
      %2540 = sbr.rel (0) target = $region73
    $region72: #{tpu_custom_call.1} parent=1 // pred_region
      %s2542 = ssub.s32 512, 512
      %2543 = vsyncadd [#allocation4], %s2542
      %s2544 = sshll.u32 [#allocation14], 4
      %s2545 = int_to_ptr.vmem [resolvable:$true] %s2544
      %2550 = dma.vmem_to_hbm [thread:$0]  %s2545, 512, %s10, [#allocation4], 128, 128, 8
    $region73: #{tpu_custom_call.1} parent=1 // pred_fallthru
      _
    // Predicated region
    $region74: #{tpu_custom_call.1} parent=1 // pred_check
      _
    $region75: #{tpu_custom_call.1} parent=1 // pred_check_branch
      %2552 = sbr.rel (0) target = $region77
    $region76: #{tpu_custom_call.1} parent=1 // pred_region
      %2553 = dma.done [#allocation4], 512
    $region77: #{tpu_custom_call.1} parent=1 // pred_fallthru
      _
    %2554 = vsyncpa [#allocation3], 1
    %2555 = vsyncpa [#allocation6], 1
    %2556 = vsyncpa [#allocation9], 1
    %2557 = vsyncpa [#allocation12], 1
    %2558 = vsyncpa [#allocation4], 1

</llo_original>
